<compile_context>
chip_gen: v7x
topology: tpu7x:2x2x1
jax: 0.10.0
libtpu: 0.0.40
codegen_flags: <defaults>
</compile_context>

<pallas_src>
import jax
import jax.numpy as jnp
from jax import lax
from jax.experimental import pallas as pl
from jax.experimental.pallas import tpu as pltpu

RADIUS = 1.0
NSAMPLE = 4
BN_EPS = 1e-5


def _round_up(v, m):
    return ((v + m - 1) // m) * m


def pointnet2_forward(x, params, batch_tile=None):
    """x: (B, T, N, C) float32; first 3 channels are xyz.  Returns ((B,N,7), (B,N,D))."""
    B, T, N, C = x.shape
    K = (T - 1) * N
    D = params["w_conv"].shape[1]

    if batch_tile is None:
        batch_tile = 1
        for cand in (8, 4, 2):
            if B % cand == 0:
                batch_tile = cand
                break
    assert B % batch_tile == 0
    Bt = batch_tile

    # ---- glue (plain JAX): slicing / transpose / weight prep ----
    new_xyz = x[:, 0, :, :3]                                         # (B, N, 3) f32
    pool_xyz_t = jnp.transpose(x[:, 1:, :, :3].reshape(B, K, 3),
                               (0, 2, 1))                            # (B, 3, K) f32
    pool_feat = x[:, 1:, :, :].reshape(B, K, C).astype(jnp.bfloat16)  # (B, K, C)

    # fold eval-mode BN into conv1 and the three fc layers
    scale = params["bn_gamma"] * lax.rsqrt(params["bn_var"] + BN_EPS)   # (1, D)
    shift = params["bn_beta"] - params["bn_mean"] * scale               # (1, D)

    w_conv_f = params["w_conv"] * scale                                 # (C, D)
    b_conv_f = params["b_conv"] * scale + shift                         # (1, D)
    w_fc_cat = jnp.concatenate([params["w_fc1"] * scale,
                                params["w_fc2"] * scale,
                                params["w_fc3"] * scale], axis=1)       # (D, 3D)
    b_fc_cat = jnp.concatenate([params["b_fc1"] * scale + shift,
                                params["b_fc2"] * scale + shift,
                                params["b_fc3"] * scale + shift], axis=1)  # (1, 3D)
    # row-stacked head weights: (3D, 7); h @ w_heads == concat of the 3 head outputs
    w_heads = jnp.concatenate([jnp.pad(params["w_ce"], ((0, 0), (0, 4))),
                               jnp.pad(params["w_lwh"], ((0, 0), (3, 1))),
                               jnp.pad(params["w_theta"], ((0, 0), (6, 0)))], axis=0)
    b_heads = jnp.concatenate([params["b_ce"], params["b_lwh"],
                               params["b_theta"]], axis=1)              # (1, 7)

    # pack every weight/bias into one 16-row-aligned, 128-lane bf16 slab
    ALIGN = 16
    off_wc = 0
    off_bc = off_wc + _round_up(C, ALIGN)
    off_wf = off_bc + ALIGN
    off_bf = off_wf + _round_up(D, ALIGN)
    off_wh = off_bf + ALIGN
    off_bh = off_wh + _round_up(3 * D, ALIGN)
    R = off_bh + ALIGN
    Lpad = _round_up(max(3 * D, D, 7), 128)

    slab = jnp.zeros((R, Lpad), jnp.float32)
    slab = slab.at[off_wc:off_wc + C, :D].set(w_conv_f)
    slab = slab.at[off_bc, :D].set(b_conv_f[0])
    slab = slab.at[off_wf:off_wf + D, :3 * D].set(w_fc_cat)
    slab = slab.at[off_bf, :3 * D].set(b_fc_cat[0])
    slab = slab.at[off_wh:off_wh + 3 * D, :7].set(w_heads)
    slab = slab.at[off_bh, :7].set(b_heads[0])
    slab = slab.astype(jnp.bfloat16)

    # constant lower-triangular matrix for the inclusive prefix count (hoisted)
    jj = jnp.arange(K)[:, None]
    kk = jnp.arange(K)[None, :]
    tri = (jj <= kk).astype(jnp.bfloat16)                              # (K, K)

    def kernel(newxyz_ref, pxyzt_ref, pfeat_ref, tri_ref, wpk_ref, out_ref, feat_ref):
        tri_b = tri_ref[...]                                           # (K, K) bf16

        # ---- ball query + grouping, per batch in the block ----
        grouped_parts = []
        for bt in range(Bt):
            nxyz = newxyz_ref[bt]                                      # (N, 3) f32
            pxt = pxyzt_ref[bt]                                        # (3, K) f32
            # lane-dense exact-f32 pairwise squared distances (no (N,K,3) blow-up)
            d2 = ((nxyz[:, 0:1] - pxt[0:1, :]) ** 2
                  + (nxyz[:, 1:2] - pxt[1:2, :]) ** 2
                  + (nxyz[:, 2:3] - pxt[2:3, :]) ** 2)                 # (N, K) f32
            mask = d2 < RADIUS * RADIUS                                # (N, K) bool
            # inclusive prefix count of in-radius hits along K, on the MXU
            rank = jnp.dot(mask.astype(jnp.bfloat16), tri_b,
                           preferred_element_type=jnp.float32)         # exact ints
            count = rank[:, K - 1:K]                                   # (N, 1) hits
            # sel_s is already one-hot (the s-th hit position); missing slot falls
            # back to the first hit; empty ball -> sel0 is all-zero -> zero features
            sel0 = jnp.where(mask & (rank == 1.0), 1.0, 0.0)
            oh_parts = [sel0]
            for s in range(1, NSAMPLE):
                sel_s = jnp.where(mask & (rank == float(s + 1)), 1.0, 0.0)
                oh_parts.append(jnp.where(count >= float(s + 1), sel_s, sel0))
            oh = jnp.concatenate(oh_parts, axis=0)                     # (4N, K)
            grouped_parts.append(
                jnp.dot(oh.astype(jnp.bfloat16), pfeat_ref[bt],
                        preferred_element_type=jnp.float32))           # (4N, C)

        grouped = (jnp.concatenate(grouped_parts, axis=0)
                   if Bt > 1 else grouped_parts[0])                    # (Bt*4N, C)

        # ---- conv1(1x1) + folded BN: one matmul across all batches & slots ----
        w_conv = wpk_ref[off_wc:off_wc + C, 0:D]                       # bf16 (C, D)
        b_conv = wpk_ref[off_bc:off_bc + 1, 0:D]                       # bf16 (1, D)
        y = jnp.dot(grouped.astype(jnp.bfloat16), w_conv,
                    preferred_element_type=jnp.float32) + b_conv       # (Bt*4N, D)

        # max over the NSAMPLE slots (static sublane slices), batch-major stack
        xf_parts = []
        for bt in range(Bt):
            base = bt * NSAMPLE * N
            xf = y[base:base + N]
            for s in range(1, NSAMPLE):
                xf = jnp.maximum(xf, y[base + s * N: base + (s + 1) * N])
            xf_parts.append(xf)
        xfeat = (jnp.concatenate(xf_parts, axis=0)
                 if Bt > 1 else xf_parts[0])                           # (Bt*N, D)

        # ---- fc1|fc2|fc3 fused (BN folded) + fused heads ----
        w_fc = wpk_ref[off_wf:off_wf + D, 0:3 * D]                     # bf16 (D, 3D)
        b_fc = wpk_ref[off_bf:off_bf + 1, 0:3 * D]                     # bf16 (1, 3D)
        h = jnp.maximum(jnp.dot(xfeat.astype(jnp.bfloat16), w_fc,
                                preferred_element_type=jnp.float32) + b_fc, 0.0)
        w_hd = wpk_ref[off_wh:off_wh + 3 * D, 0:7]                     # bf16 (3D, 7)
        b_hd = wpk_ref[off_bh:off_bh + 1, 0:7]                         # bf16 (1, 7)
        out = jnp.dot(h.astype(jnp.bfloat16), w_hd,
                      preferred_element_type=jnp.float32) + b_hd       # (Bt*N, 7)

        for bt in range(Bt):
            feat_ref[bt] = xfeat[bt * N:(bt + 1) * N].astype(feat_ref.dtype)
            out_ref[bt] = out[bt * N:(bt + 1) * N].astype(out_ref.dtype)

    in_specs = [
        pl.BlockSpec((Bt, N, 3), lambda b: (b, 0, 0)),
        pl.BlockSpec((Bt, 3, K), lambda b: (b, 0, 0)),
        pl.BlockSpec((Bt, K, C), lambda b: (b, 0, 0)),
        pl.BlockSpec((K, K), lambda b: (0, 0)),
        pl.BlockSpec((R, Lpad), lambda b: (0, 0)),
    ]
    out_specs = (
        pl.BlockSpec((Bt, N, 7), lambda b: (b, 0, 0)),
        pl.BlockSpec((Bt, N, D), lambda b: (b, 0, 0)),
    )
    out_shapes = (jax.ShapeDtypeStruct((B, N, 7), jnp.float32),
                  jax.ShapeDtypeStruct((B, N, D), jnp.float32))

    out, feature = pl.pallas_call(
        kernel,
        out_shape=out_shapes,
        grid=(B // Bt,),
        in_specs=in_specs,
        out_specs=out_specs,
        compiler_params=pltpu.CompilerParams(dimension_semantics=("parallel",)),
    )(new_xyz, pool_xyz_t, pool_feat, tri, slab)
    return out, feature


def pointnet2_ref(x, params):
    """Pure-JAX reference with identical semantics (for sanity checking)."""
    B, T, N, C = x.shape
    K = (T - 1) * N
    new_xyz = x[:, 0, :, :3]
    pool_xyz = x[:, 1:, :, :3].reshape(B, K, 3)
    pool_feat = x[:, 1:, :, :].reshape(B, K, C)
    scale = params["bn_gamma"] / jnp.sqrt(params["bn_var"] + BN_EPS)
    shift = params["bn_beta"] - params["bn_mean"] * scale
    hp = lax.Precision.HIGHEST

    def one_batch(nxyz, pxyz, pfeat):
        # same per-coordinate f32 distance formula as the kernel
        d2 = ((nxyz[:, 0:1] - pxyz[None, :, 0]) ** 2
              + (nxyz[:, 1:2] - pxyz[None, :, 1]) ** 2
              + (nxyz[:, 2:3] - pxyz[None, :, 2]) ** 2)
        mask = d2 < RADIUS * RADIUS
        rank = jnp.cumsum(mask.astype(jnp.int32), axis=1)
        kidx = jnp.arange(K)[None, :]
        idx0 = anyf = None
        xfeat = None
        for s in range(NSAMPLE):
            sel = mask & (rank == s + 1)
            cand = jnp.where(sel, kidx, K)
            idx_s = jnp.min(cand, axis=1, keepdims=True)
            if s == 0:
                idx0 = idx_s
                anyf = idx0 < K
            idx_s = jnp.where(idx_s < K, idx_s, idx0)
            idx_s = jnp.where(anyf, idx_s, 0)
            g = pfeat[idx_s[:, 0]] * anyf.astype(jnp.float32)
            y = jnp.dot(g, params["w_conv"], precision=hp) + params["b_conv"]
            y = y * scale + shift
            xfeat = y if xfeat is None else jnp.maximum(xfeat, y)

        def head(wfc, bfc, wout, bout):
            h = jnp.maximum((jnp.dot(xfeat, wfc, precision=hp) + bfc) * scale + shift, 0.0)
            return jnp.dot(h, wout, precision=hp) + bout

        xc = head(params["w_fc1"], params["b_fc1"], params["w_ce"], params["b_ce"])
        xl = head(params["w_fc2"], params["b_fc2"], params["w_lwh"], params["b_lwh"])
        xt = head(params["w_fc3"], params["b_fc3"], params["w_theta"], params["b_theta"])
        return jnp.concatenate([xc, xl, xt], -1), xfeat

    return jax.vmap(one_batch)(new_xyz, pool_xyz, pool_feat)


def init_params(key, input_dim, num_dim):
    ks = jax.random.split(key, 18)

    def lin(k, fi, fo):
        return jax.random.normal(k, (fi, fo), jnp.float32) / jnp.sqrt(float(fi))

    p = {}
    p["w_conv"] = lin(ks[0], input_dim, num_dim)
    p["b_conv"] = 0.1 * jax.random.normal(ks[1], (1, num_dim), jnp.float32)
    p["bn_gamma"] = 1.0 + 0.1 * jax.random.normal(ks[2], (1, num_dim), jnp.float32)
    p["bn_beta"] = 0.1 * jax.random.normal(ks[3], (1, num_dim), jnp.float32)
    p["bn_mean"] = 0.1 * jax.random.normal(ks[4], (1, num_dim), jnp.float32)
    p["bn_var"] = 0.5 + 0.5 * jnp.abs(jax.random.normal(ks[5], (1, num_dim), jnp.float32))
    p["w_fc1"] = lin(ks[6], num_dim, num_dim)
    p["b_fc1"] = 0.1 * jax.random.normal(ks[7], (1, num_dim), jnp.float32)
    p["w_ce"] = lin(ks[8], num_dim, 3)
    p["b_ce"] = 0.1 * jax.random.normal(ks[9], (1, 3), jnp.float32)
    p["w_fc2"] = lin(ks[10], num_dim, num_dim)
    p["b_fc2"] = 0.1 * jax.random.normal(ks[11], (1, num_dim), jnp.float32)
    p["w_lwh"] = lin(ks[12], num_dim, 3)
    p["b_lwh"] = 0.1 * jax.random.normal(ks[13], (1, 3), jnp.float32)
    p["w_fc3"] = lin(ks[14], num_dim, num_dim)
    p["b_fc3"] = 0.1 * jax.random.normal(ks[15], (1, num_dim), jnp.float32)
    p["w_theta"] = lin(ks[16], num_dim, 1)
    p["b_theta"] = 0.1 * jax.random.normal(ks[17], (1, 1), jnp.float32)
    return p


if __name__ == "__main__":
    key = jax.random.PRNGKey(0)
    B, T, N, C, D = 2, 4, 16, 8, 32   # input_dim=8, POINT_DIM=32
    kx, kp = jax.random.split(key)
    x = jax.random.uniform(kx, (B, T, N, C), jnp.float32, minval=-1.0, maxval=1.0)
    params = init_params(kp, C, D)

    out, feature = pointnet2_forward(x, params)
    out = jax.block_until_ready(out)
    feature = jax.block_until_ready(feature)

    assert out.shape == (B, N, 7) and feature.shape == (B, N, D)
    assert bool(jnp.all(jnp.isfinite(out))) and bool(jnp.all(jnp.isfinite(feature)))

    ref_out, ref_feat = pointnet2_ref(x, params)
    assert jnp.allclose(out, ref_out, atol=1e-1, rtol=1e-1)
    assert jnp.allclose(feature, ref_feat, atol=1e-1, rtol=1e-1)

    print("KERNEL_OK")
</pallas_src>

<mosaic_0001>
module attributes {stable_mosaic.version = 11 : i64} {
  func.func @kernel(%arg0: i32, %arg1: memref<2x16x3xf32, #tpu.memory_space<vmem>>, %arg2: memref<2x3x48xf32, #tpu.memory_space<vmem>>, %arg3: memref<2x48x8xbf16, #tpu.memory_space<vmem>>, %arg4: memref<48x48xbf16, #tpu.memory_space<vmem>>, %arg5: memref<192x128xbf16, #tpu.memory_space<vmem>>, %arg6: memref<2x16x7xf32, #tpu.memory_space<vmem>>, %arg7: memref<2x16x32xf32, #tpu.memory_space<vmem>>) attributes {dimension_semantics = [#tpu.dimension_semantics<parallel>], iteration_bounds = array<i64: 1>, scalar_prefetch = 0 : i64, scratch_operands = 0 : i64, tpu.core_type = #tpu.core_type<tc>, window_params = [{transform_indices = @transform_0, window_bounds = array<i64: 2, 16, 3>}, {transform_indices = @transform_1, window_bounds = array<i64: 2, 3, 48>}, {transform_indices = @transform_2, window_bounds = array<i64: 2, 48, 8>}, {pipeline_mode = #tpu.pipeline_mode<synchronous>, transform_indices = @transform_3, window_bounds = array<i64: 48, 48>}, {pipeline_mode = #tpu.pipeline_mode<synchronous>, transform_indices = @transform_4, window_bounds = array<i64: 192, 128>}, {transform_indices = @transform_5, window_bounds = array<i64: 2, 16, 7>}, {transform_indices = @transform_6, window_bounds = array<i64: 2, 16, 32>}]} {
    %c0 = arith.constant 0 : index
    %c0_0 = arith.constant 0 : index
    %0 = vector.load %arg4[%c0, %c0_0] : memref<48x48xbf16, #tpu.memory_space<vmem>>, vector<48x48xbf16>
    %c0_1 = arith.constant 0 : index
    %c0_2 = arith.constant 0 : index
    %c0_3 = arith.constant 0 : index
    %1 = vector.load %arg1[%c0_1, %c0_2, %c0_3] : memref<2x16x3xf32, #tpu.memory_space<vmem>>, vector<1x16x3xf32>
    %2 = vector.shape_cast %1 : vector<1x16x3xf32> to vector<16x3xf32>
    %c0_4 = arith.constant 0 : index
    %c0_5 = arith.constant 0 : index
    %c0_6 = arith.constant 0 : index
    %3 = vector.load %arg2[%c0_4, %c0_5, %c0_6] : memref<2x3x48xf32, #tpu.memory_space<vmem>>, vector<1x3x48xf32>
    %4 = vector.shape_cast %3 : vector<1x3x48xf32> to vector<3x48xf32>
    %5 = vector.extract_strided_slice %2 {offsets = [0, 0], sizes = [16, 1], strides = [1, 1]} : vector<16x3xf32> to vector<16x1xf32>
    %6 = vector.extract_strided_slice %4 {offsets = [0, 0], sizes = [1, 48], strides = [1, 1]} : vector<3x48xf32> to vector<1x48xf32>
    %7 = vector.broadcast %5 : vector<16x1xf32> to vector<16x48xf32>
    %8 = vector.broadcast %6 : vector<1x48xf32> to vector<16x48xf32>
    %9 = arith.subf %7, %8 : vector<16x48xf32>
    %10 = arith.mulf %9, %9 : vector<16x48xf32>
    %11 = vector.extract_strided_slice %2 {offsets = [0, 1], sizes = [16, 1], strides = [1, 1]} : vector<16x3xf32> to vector<16x1xf32>
    %12 = vector.extract_strided_slice %4 {offsets = [1, 0], sizes = [1, 48], strides = [1, 1]} : vector<3x48xf32> to vector<1x48xf32>
    %13 = vector.broadcast %11 : vector<16x1xf32> to vector<16x48xf32>
    %14 = vector.broadcast %12 : vector<1x48xf32> to vector<16x48xf32>
    %15 = arith.subf %13, %14 : vector<16x48xf32>
    %16 = arith.mulf %15, %15 : vector<16x48xf32>
    %17 = arith.addf %10, %16 : vector<16x48xf32>
    %18 = vector.extract_strided_slice %2 {offsets = [0, 2], sizes = [16, 1], strides = [1, 1]} : vector<16x3xf32> to vector<16x1xf32>
    %19 = vector.extract_strided_slice %4 {offsets = [2, 0], sizes = [1, 48], strides = [1, 1]} : vector<3x48xf32> to vector<1x48xf32>
    %20 = vector.broadcast %18 : vector<16x1xf32> to vector<16x48xf32>
    %21 = vector.broadcast %19 : vector<1x48xf32> to vector<16x48xf32>
    %22 = arith.subf %20, %21 : vector<16x48xf32>
    %23 = arith.mulf %22, %22 : vector<16x48xf32>
    %24 = arith.addf %17, %23 : vector<16x48xf32>
    %cst = arith.constant 1.000000e+00 : f32
    %25 = vector.broadcast %cst : f32 to vector<16x48xf32>
    %26 = arith.cmpf olt, %24, %25 : vector<16x48xf32>
    %27 = arith.extui %26 : vector<16x48xi1> to vector<16x48xi32>
    %28 = arith.sitofp %27 : vector<16x48xi32> to vector<16x48xf32>
    %29 = arith.truncf %28 : vector<16x48xf32> to vector<16x48xbf16>
    %cst_7 = arith.constant dense<0.000000e+00> : vector<16x48xf32>
    %30 = tpu.matmul %29, %0, %cst_7 {dimension_numbers = #tpu.dot_dimension_numbers<[1], [0], [0], [1], [0, 0, 1, 1], [], []>} : vector<16x48xbf16>, vector<48x48xbf16>, vector<16x48xf32> -> vector<16x48xf32>
    %31 = vector.extract_strided_slice %30 {offsets = [0, 47], sizes = [16, 1], strides = [1, 1]} : vector<16x48xf32> to vector<16x1xf32>
    %cst_8 = arith.constant 1.000000e+00 : f32
    %32 = vector.broadcast %cst_8 : f32 to vector<16x48xf32>
    %33 = arith.cmpf oeq, %30, %32 : vector<16x48xf32>
    %34 = arith.andi %26, %33 : vector<16x48xi1>
    %cst_9 = arith.constant 1.000000e+00 : f32
    %cst_10 = arith.constant 0.000000e+00 : f32
    %35 = vector.broadcast %cst_9 : f32 to vector<16x48xf32>
    %36 = vector.broadcast %cst_10 : f32 to vector<16x48xf32>
    %37 = arith.select %34, %35, %36 : vector<16x48xi1>, vector<16x48xf32>
    %cst_11 = arith.constant 2.000000e+00 : f32
    %38 = vector.broadcast %cst_11 : f32 to vector<16x48xf32>
    %39 = arith.cmpf oeq, %30, %38 : vector<16x48xf32>
    %40 = arith.andi %26, %39 : vector<16x48xi1>
    %cst_12 = arith.constant 1.000000e+00 : f32
    %cst_13 = arith.constant 0.000000e+00 : f32
    %41 = vector.broadcast %cst_12 : f32 to vector<16x48xf32>
    %42 = vector.broadcast %cst_13 : f32 to vector<16x48xf32>
    %43 = arith.select %40, %41, %42 : vector<16x48xi1>, vector<16x48xf32>
    %cst_14 = arith.constant 2.000000e+00 : f32
    %44 = vector.broadcast %cst_14 : f32 to vector<16x1xf32>
    %45 = arith.cmpf oge, %31, %44 : vector<16x1xf32>
    %46 = vector.shape_cast %45 : vector<16x1xi1> to vector<16x1xi1>
    %47 = vector.broadcast %46 : vector<16x1xi1> to vector<16x48xi1>
    %48 = arith.select %47, %43, %37 : vector<16x48xi1>, vector<16x48xf32>
    %cst_15 = arith.constant 3.000000e+00 : f32
    %49 = vector.broadcast %cst_15 : f32 to vector<16x48xf32>
    %50 = arith.cmpf oeq, %30, %49 : vector<16x48xf32>
    %51 = arith.andi %26, %50 : vector<16x48xi1>
    %cst_16 = arith.constant 1.000000e+00 : f32
    %cst_17 = arith.constant 0.000000e+00 : f32
    %52 = vector.broadcast %cst_16 : f32 to vector<16x48xf32>
    %53 = vector.broadcast %cst_17 : f32 to vector<16x48xf32>
    %54 = arith.select %51, %52, %53 : vector<16x48xi1>, vector<16x48xf32>
    %cst_18 = arith.constant 3.000000e+00 : f32
    %55 = vector.broadcast %cst_18 : f32 to vector<16x1xf32>
    %56 = arith.cmpf oge, %31, %55 : vector<16x1xf32>
    %57 = vector.shape_cast %56 : vector<16x1xi1> to vector<16x1xi1>
    %58 = vector.broadcast %57 : vector<16x1xi1> to vector<16x48xi1>
    %59 = arith.select %58, %54, %37 : vector<16x48xi1>, vector<16x48xf32>
    %cst_19 = arith.constant 4.000000e+00 : f32
    %60 = vector.broadcast %cst_19 : f32 to vector<16x48xf32>
    %61 = arith.cmpf oeq, %30, %60 : vector<16x48xf32>
    %62 = arith.andi %26, %61 : vector<16x48xi1>
    %cst_20 = arith.constant 1.000000e+00 : f32
    %cst_21 = arith.constant 0.000000e+00 : f32
    %63 = vector.broadcast %cst_20 : f32 to vector<16x48xf32>
    %64 = vector.broadcast %cst_21 : f32 to vector<16x48xf32>
    %65 = arith.select %62, %63, %64 : vector<16x48xi1>, vector<16x48xf32>
    %cst_22 = arith.constant 4.000000e+00 : f32
    %66 = vector.broadcast %cst_22 : f32 to vector<16x1xf32>
    %67 = arith.cmpf oge, %31, %66 : vector<16x1xf32>
    %68 = vector.shape_cast %67 : vector<16x1xi1> to vector<16x1xi1>
    %69 = vector.broadcast %68 : vector<16x1xi1> to vector<16x48xi1>
    %70 = arith.select %69, %65, %37 : vector<16x48xi1>, vector<16x48xf32>
    %71 = tpu.concatenate %37, %48, %59, %70 in 0 : vector<16x48xf32>, vector<16x48xf32>, vector<16x48xf32>, vector<16x48xf32> -> vector<64x48xf32>
    %72 = arith.truncf %71 : vector<64x48xf32> to vector<64x48xbf16>
    %c0_23 = arith.constant 0 : index
    %c0_24 = arith.constant 0 : index
    %c0_25 = arith.constant 0 : index
    %73 = vector.load %arg3[%c0_23, %c0_24, %c0_25] : memref<2x48x8xbf16, #tpu.memory_space<vmem>>, vector<1x48x8xbf16>
    %74 = vector.shape_cast %73 : vector<1x48x8xbf16> to vector<48x8xbf16>
    %cst_26 = arith.constant dense<0.000000e+00> : vector<64x8xf32>
    %75 = tpu.matmul %72, %74, %cst_26 {dimension_numbers = #tpu.dot_dimension_numbers<[1], [0], [0], [1], [0, 0, 1, 1], [], []>} : vector<64x48xbf16>, vector<48x8xbf16>, vector<64x8xf32> -> vector<64x8xf32>
    %c1 = arith.constant 1 : index
    %c0_27 = arith.constant 0 : index
    %c0_28 = arith.constant 0 : index
    %76 = vector.load %arg1[%c1, %c0_27, %c0_28] : memref<2x16x3xf32, #tpu.memory_space<vmem>>, vector<1x16x3xf32>
    %77 = vector.shape_cast %76 : vector<1x16x3xf32> to vector<16x3xf32>
    %c1_29 = arith.constant 1 : index
    %c0_30 = arith.constant 0 : index
    %c0_31 = arith.constant 0 : index
    %78 = vector.load %arg2[%c1_29, %c0_30, %c0_31] : memref<2x3x48xf32, #tpu.memory_space<vmem>>, vector<1x3x48xf32>
    %79 = vector.shape_cast %78 : vector<1x3x48xf32> to vector<3x48xf32>
    %80 = vector.extract_strided_slice %77 {offsets = [0, 0], sizes = [16, 1], strides = [1, 1]} : vector<16x3xf32> to vector<16x1xf32>
    %81 = vector.extract_strided_slice %79 {offsets = [0, 0], sizes = [1, 48], strides = [1, 1]} : vector<3x48xf32> to vector<1x48xf32>
    %82 = vector.broadcast %80 : vector<16x1xf32> to vector<16x48xf32>
    %83 = vector.broadcast %81 : vector<1x48xf32> to vector<16x48xf32>
    %84 = arith.subf %82, %83 : vector<16x48xf32>
    %85 = arith.mulf %84, %84 : vector<16x48xf32>
    %86 = vector.extract_strided_slice %77 {offsets = [0, 1], sizes = [16, 1], strides = [1, 1]} : vector<16x3xf32> to vector<16x1xf32>
    %87 = vector.extract_strided_slice %79 {offsets = [1, 0], sizes = [1, 48], strides = [1, 1]} : vector<3x48xf32> to vector<1x48xf32>
    %88 = vector.broadcast %86 : vector<16x1xf32> to vector<16x48xf32>
    %89 = vector.broadcast %87 : vector<1x48xf32> to vector<16x48xf32>
    %90 = arith.subf %88, %89 : vector<16x48xf32>
    %91 = arith.mulf %90, %90 : vector<16x48xf32>
    %92 = arith.addf %85, %91 : vector<16x48xf32>
    %93 = vector.extract_strided_slice %77 {offsets = [0, 2], sizes = [16, 1], strides = [1, 1]} : vector<16x3xf32> to vector<16x1xf32>
    %94 = vector.extract_strided_slice %79 {offsets = [2, 0], sizes = [1, 48], strides = [1, 1]} : vector<3x48xf32> to vector<1x48xf32>
    %95 = vector.broadcast %93 : vector<16x1xf32> to vector<16x48xf32>
    %96 = vector.broadcast %94 : vector<1x48xf32> to vector<16x48xf32>
    %97 = arith.subf %95, %96 : vector<16x48xf32>
    %98 = arith.mulf %97, %97 : vector<16x48xf32>
    %99 = arith.addf %92, %98 : vector<16x48xf32>
    %cst_32 = arith.constant 1.000000e+00 : f32
    %100 = vector.broadcast %cst_32 : f32 to vector<16x48xf32>
    %101 = arith.cmpf olt, %99, %100 : vector<16x48xf32>
    %102 = arith.extui %101 : vector<16x48xi1> to vector<16x48xi32>
    %103 = arith.sitofp %102 : vector<16x48xi32> to vector<16x48xf32>
    %104 = arith.truncf %103 : vector<16x48xf32> to vector<16x48xbf16>
    %cst_33 = arith.constant dense<0.000000e+00> : vector<16x48xf32>
    %105 = tpu.matmul %104, %0, %cst_33 {dimension_numbers = #tpu.dot_dimension_numbers<[1], [0], [0], [1], [0, 0, 1, 1], [], []>} : vector<16x48xbf16>, vector<48x48xbf16>, vector<16x48xf32> -> vector<16x48xf32>
    %106 = vector.extract_strided_slice %105 {offsets = [0, 47], sizes = [16, 1], strides = [1, 1]} : vector<16x48xf32> to vector<16x1xf32>
    %cst_34 = arith.constant 1.000000e+00 : f32
    %107 = vector.broadcast %cst_34 : f32 to vector<16x48xf32>
    %108 = arith.cmpf oeq, %105, %107 : vector<16x48xf32>
    %109 = arith.andi %101, %108 : vector<16x48xi1>
    %cst_35 = arith.constant 1.000000e+00 : f32
    %cst_36 = arith.constant 0.000000e+00 : f32
    %110 = vector.broadcast %cst_35 : f32 to vector<16x48xf32>
    %111 = vector.broadcast %cst_36 : f32 to vector<16x48xf32>
    %112 = arith.select %109, %110, %111 : vector<16x48xi1>, vector<16x48xf32>
    %cst_37 = arith.constant 2.000000e+00 : f32
    %113 = vector.broadcast %cst_37 : f32 to vector<16x48xf32>
    %114 = arith.cmpf oeq, %105, %113 : vector<16x48xf32>
    %115 = arith.andi %101, %114 : vector<16x48xi1>
    %cst_38 = arith.constant 1.000000e+00 : f32
    %cst_39 = arith.constant 0.000000e+00 : f32
    %116 = vector.broadcast %cst_38 : f32 to vector<16x48xf32>
    %117 = vector.broadcast %cst_39 : f32 to vector<16x48xf32>
    %118 = arith.select %115, %116, %117 : vector<16x48xi1>, vector<16x48xf32>
    %cst_40 = arith.constant 2.000000e+00 : f32
    %119 = vector.broadcast %cst_40 : f32 to vector<16x1xf32>
    %120 = arith.cmpf oge, %106, %119 : vector<16x1xf32>
    %121 = vector.shape_cast %120 : vector<16x1xi1> to vector<16x1xi1>
    %122 = vector.broadcast %121 : vector<16x1xi1> to vector<16x48xi1>
    %123 = arith.select %122, %118, %112 : vector<16x48xi1>, vector<16x48xf32>
    %cst_41 = arith.constant 3.000000e+00 : f32
    %124 = vector.broadcast %cst_41 : f32 to vector<16x48xf32>
    %125 = arith.cmpf oeq, %105, %124 : vector<16x48xf32>
    %126 = arith.andi %101, %125 : vector<16x48xi1>
    %cst_42 = arith.constant 1.000000e+00 : f32
    %cst_43 = arith.constant 0.000000e+00 : f32
    %127 = vector.broadcast %cst_42 : f32 to vector<16x48xf32>
    %128 = vector.broadcast %cst_43 : f32 to vector<16x48xf32>
    %129 = arith.select %126, %127, %128 : vector<16x48xi1>, vector<16x48xf32>
    %cst_44 = arith.constant 3.000000e+00 : f32
    %130 = vector.broadcast %cst_44 : f32 to vector<16x1xf32>
    %131 = arith.cmpf oge, %106, %130 : vector<16x1xf32>
    %132 = vector.shape_cast %131 : vector<16x1xi1> to vector<16x1xi1>
    %133 = vector.broadcast %132 : vector<16x1xi1> to vector<16x48xi1>
    %134 = arith.select %133, %129, %112 : vector<16x48xi1>, vector<16x48xf32>
    %cst_45 = arith.constant 4.000000e+00 : f32
    %135 = vector.broadcast %cst_45 : f32 to vector<16x48xf32>
    %136 = arith.cmpf oeq, %105, %135 : vector<16x48xf32>
    %137 = arith.andi %101, %136 : vector<16x48xi1>
    %cst_46 = arith.constant 1.000000e+00 : f32
    %cst_47 = arith.constant 0.000000e+00 : f32
    %138 = vector.broadcast %cst_46 : f32 to vector<16x48xf32>
    %139 = vector.broadcast %cst_47 : f32 to vector<16x48xf32>
    %140 = arith.select %137, %138, %139 : vector<16x48xi1>, vector<16x48xf32>
    %cst_48 = arith.constant 4.000000e+00 : f32
    %141 = vector.broadcast %cst_48 : f32 to vector<16x1xf32>
    %142 = arith.cmpf oge, %106, %141 : vector<16x1xf32>
    %143 = vector.shape_cast %142 : vector<16x1xi1> to vector<16x1xi1>
    %144 = vector.broadcast %143 : vector<16x1xi1> to vector<16x48xi1>
    %145 = arith.select %144, %140, %112 : vector<16x48xi1>, vector<16x48xf32>
    %146 = tpu.concatenate %112, %123, %134, %145 in 0 : vector<16x48xf32>, vector<16x48xf32>, vector<16x48xf32>, vector<16x48xf32> -> vector<64x48xf32>
    %147 = arith.truncf %146 : vector<64x48xf32> to vector<64x48xbf16>
    %c1_49 = arith.constant 1 : index
    %c0_50 = arith.constant 0 : index
    %c0_51 = arith.constant 0 : index
    %148 = vector.load %arg3[%c1_49, %c0_50, %c0_51] : memref<2x48x8xbf16, #tpu.memory_space<vmem>>, vector<1x48x8xbf16>
    %149 = vector.shape_cast %148 : vector<1x48x8xbf16> to vector<48x8xbf16>
    %cst_52 = arith.constant dense<0.000000e+00> : vector<64x8xf32>
    %150 = tpu.matmul %147, %149, %cst_52 {dimension_numbers = #tpu.dot_dimension_numbers<[1], [0], [0], [1], [0, 0, 1, 1], [], []>} : vector<64x48xbf16>, vector<48x8xbf16>, vector<64x8xf32> -> vector<64x8xf32>
    %151 = tpu.concatenate %75, %150 in 0 : vector<64x8xf32>, vector<64x8xf32> -> vector<128x8xf32>
    %c0_53 = arith.constant 0 : index
    %c0_54 = arith.constant 0 : index
    %152 = vector.load %arg5[%c0_53, %c0_54] : memref<192x128xbf16, #tpu.memory_space<vmem>>, vector<8x32xbf16>
    %c16 = arith.constant 16 : index
    %c0_55 = arith.constant 0 : index
    %153 = vector.load %arg5[%c16, %c0_55] : memref<192x128xbf16, #tpu.memory_space<vmem>>, vector<1x32xbf16>
    %154 = arith.truncf %151 : vector<128x8xf32> to vector<128x8xbf16>
    %cst_56 = arith.constant dense<0.000000e+00> : vector<128x32xf32>
    %155 = tpu.matmul %154, %152, %cst_56 {dimension_numbers = #tpu.dot_dimension_numbers<[1], [0], [0], [1], [0, 0, 1, 1], [], []>} : vector<128x8xbf16>, vector<8x32xbf16>, vector<128x32xf32> -> vector<128x32xf32>
    %156 = arith.extf %153 : vector<1x32xbf16> to vector<1x32xf32>
    %157 = vector.broadcast %156 : vector<1x32xf32> to vector<128x32xf32>
    %158 = arith.addf %155, %157 : vector<128x32xf32>
    %159 = vector.extract_strided_slice %158 {offsets = [0, 0], sizes = [16, 32], strides = [1, 1]} : vector<128x32xf32> to vector<16x32xf32>
    %160 = vector.extract_strided_slice %158 {offsets = [16, 0], sizes = [16, 32], strides = [1, 1]} : vector<128x32xf32> to vector<16x32xf32>
    %161 = arith.maximumf %159, %160 : vector<16x32xf32>
    %162 = vector.extract_strided_slice %158 {offsets = [32, 0], sizes = [16, 32], strides = [1, 1]} : vector<128x32xf32> to vector<16x32xf32>
    %163 = arith.maximumf %161, %162 : vector<16x32xf32>
    %164 = vector.extract_strided_slice %158 {offsets = [48, 0], sizes = [16, 32], strides = [1, 1]} : vector<128x32xf32> to vector<16x32xf32>
    %165 = arith.maximumf %163, %164 : vector<16x32xf32>
    %166 = vector.extract_strided_slice %158 {offsets = [64, 0], sizes = [16, 32], strides = [1, 1]} : vector<128x32xf32> to vector<16x32xf32>
    %167 = vector.extract_strided_slice %158 {offsets = [80, 0], sizes = [16, 32], strides = [1, 1]} : vector<128x32xf32> to vector<16x32xf32>
    %168 = arith.maximumf %166, %167 : vector<16x32xf32>
    %169 = vector.extract_strided_slice %158 {offsets = [96, 0], sizes = [16, 32], strides = [1, 1]} : vector<128x32xf32> to vector<16x32xf32>
    %170 = arith.maximumf %168, %169 : vector<16x32xf32>
    %171 = vector.extract_strided_slice %158 {offsets = [112, 0], sizes = [16, 32], strides = [1, 1]} : vector<128x32xf32> to vector<16x32xf32>
    %172 = arith.maximumf %170, %171 : vector<16x32xf32>
    %173 = tpu.concatenate %165, %172 in 0 : vector<16x32xf32>, vector<16x32xf32> -> vector<32x32xf32>
    %c32 = arith.constant 32 : index
    %c0_57 = arith.constant 0 : index
    %174 = vector.load %arg5[%c32, %c0_57] : memref<192x128xbf16, #tpu.memory_space<vmem>>, vector<32x96xbf16>
    %c64 = arith.constant 64 : index
    %c0_58 = arith.constant 0 : index
    %175 = vector.load %arg5[%c64, %c0_58] : memref<192x128xbf16, #tpu.memory_space<vmem>>, vector<1x96xbf16>
    %176 = arith.truncf %173 : vector<32x32xf32> to vector<32x32xbf16>
    %cst_59 = arith.constant dense<0.000000e+00> : vector<32x96xf32>
    %177 = tpu.matmul %176, %174, %cst_59 {dimension_numbers = #tpu.dot_dimension_numbers<[1], [0], [0], [1], [0, 0, 1, 1], [], []>} : vector<32x32xbf16>, vector<32x96xbf16>, vector<32x96xf32> -> vector<32x96xf32>
    %178 = arith.extf %175 : vector<1x96xbf16> to vector<1x96xf32>
    %179 = vector.broadcast %178 : vector<1x96xf32> to vector<32x96xf32>
    %180 = arith.addf %177, %179 : vector<32x96xf32>
    %cst_60 = arith.constant 0.000000e+00 : f32
    %181 = vector.broadcast %cst_60 : f32 to vector<32x96xf32>
    %182 = arith.maximumf %180, %181 : vector<32x96xf32>
    %c80 = arith.constant 80 : index
    %c0_61 = arith.constant 0 : index
    %183 = vector.load %arg5[%c80, %c0_61] : memref<192x128xbf16, #tpu.memory_space<vmem>>, vector<96x7xbf16>
    %c176 = arith.constant 176 : index
    %c0_62 = arith.constant 0 : index
    %184 = vector.load %arg5[%c176, %c0_62] : memref<192x128xbf16, #tpu.memory_space<vmem>>, vector<1x7xbf16>
    %185 = arith.truncf %182 : vector<32x96xf32> to vector<32x96xbf16>
    %cst_63 = arith.constant dense<0.000000e+00> : vector<32x7xf32>
    %186 = tpu.matmul %185, %183, %cst_63 {dimension_numbers = #tpu.dot_dimension_numbers<[1], [0], [0], [1], [0, 0, 1, 1], [], []>} : vector<32x96xbf16>, vector<96x7xbf16>, vector<32x7xf32> -> vector<32x7xf32>
    %187 = arith.extf %184 : vector<1x7xbf16> to vector<1x7xf32>
    %188 = vector.broadcast %187 : vector<1x7xf32> to vector<32x7xf32>
    %189 = arith.addf %186, %188 : vector<32x7xf32>
    %190 = vector.extract_strided_slice %173 {offsets = [0, 0], sizes = [16, 32], strides = [1, 1]} : vector<32x32xf32> to vector<16x32xf32>
    %c0_64 = arith.constant 0 : index
    %c0_65 = arith.constant 0 : index
    %c0_66 = arith.constant 0 : index
    %191 = vector.load %arg7[%c0_64, %c0_65, %c0_66] : memref<2x16x32xf32, #tpu.memory_space<vmem>>, vector<1x16x32xf32>
    %192 = vector.shape_cast %191 : vector<1x16x32xf32> to vector<16x32xf32>
    %193 = vector.shape_cast %190 : vector<16x32xf32> to vector<1x16x32xf32>
    tpu.vector_store %arg7[%c0_64, %c0_65, %c0_66], %193 {strides = array<i32>} : memref<2x16x32xf32, #tpu.memory_space<vmem>>, vector<1x16x32xf32>,
    %194 = vector.extract_strided_slice %189 {offsets = [0, 0], sizes = [16, 7], strides = [1, 1]} : vector<32x7xf32> to vector<16x7xf32>
    %c0_67 = arith.constant 0 : index
    %c0_68 = arith.constant 0 : index
    %c0_69 = arith.constant 0 : index
    %195 = vector.load %arg6[%c0_67, %c0_68, %c0_69] : memref<2x16x7xf32, #tpu.memory_space<vmem>>, vector<1x16x7xf32>
    %196 = vector.shape_cast %195 : vector<1x16x7xf32> to vector<16x7xf32>
    %197 = vector.shape_cast %194 : vector<16x7xf32> to vector<1x16x7xf32>
    tpu.vector_store %arg6[%c0_67, %c0_68, %c0_69], %197 {strides = array<i32>} : memref<2x16x7xf32, #tpu.memory_space<vmem>>, vector<1x16x7xf32>,
    %198 = vector.extract_strided_slice %173 {offsets = [16, 0], sizes = [16, 32], strides = [1, 1]} : vector<32x32xf32> to vector<16x32xf32>
    %c1_70 = arith.constant 1 : index
    %c0_71 = arith.constant 0 : index
    %c0_72 = arith.constant 0 : index
    %199 = vector.load %arg7[%c1_70, %c0_71, %c0_72] : memref<2x16x32xf32, #tpu.memory_space<vmem>>, vector<1x16x32xf32>
    %200 = vector.shape_cast %199 : vector<1x16x32xf32> to vector<16x32xf32>
    %201 = vector.shape_cast %198 : vector<16x32xf32> to vector<1x16x32xf32>
    tpu.vector_store %arg7[%c1_70, %c0_71, %c0_72], %201 {strides = array<i32>} : memref<2x16x32xf32, #tpu.memory_space<vmem>>, vector<1x16x32xf32>,
    %202 = vector.extract_strided_slice %189 {offsets = [16, 0], sizes = [16, 7], strides = [1, 1]} : vector<32x7xf32> to vector<16x7xf32>
    %c1_73 = arith.constant 1 : index
    %c0_74 = arith.constant 0 : index
    %c0_75 = arith.constant 0 : index
    %203 = vector.load %arg6[%c1_73, %c0_74, %c0_75] : memref<2x16x7xf32, #tpu.memory_space<vmem>>, vector<1x16x7xf32>
    %204 = vector.shape_cast %203 : vector<1x16x7xf32> to vector<16x7xf32>
    %205 = vector.shape_cast %202 : vector<16x7xf32> to vector<1x16x7xf32>
    tpu.vector_store %arg6[%c1_73, %c0_74, %c0_75], %205 {strides = array<i32>} : memref<2x16x7xf32, #tpu.memory_space<vmem>>, vector<1x16x7xf32>,
    return
  }
  func.func @transform_0(%arg0: i32) -> (i32, i32, i32) {
    %c0_i32 = arith.constant 0 : i32
    %c0_i32_0 = arith.constant 0 : i32
    %c0_i32_1 = arith.constant 0 : i32
    return %arg0, %c0_i32, %c0_i32_0 : i32, i32, i32
  }
  func.func @transform_1(%arg0: i32) -> (i32, i32, i32) {
    %c0_i32 = arith.constant 0 : i32
    %c0_i32_0 = arith.constant 0 : i32
    %c0_i32_1 = arith.constant 0 : i32
    return %arg0, %c0_i32, %c0_i32_0 : i32, i32, i32
  }
  func.func @transform_2(%arg0: i32) -> (i32, i32, i32) {
    %c0_i32 = arith.constant 0 : i32
    %c0_i32_0 = arith.constant 0 : i32
    %c0_i32_1 = arith.constant 0 : i32
    return %arg0, %c0_i32, %c0_i32_0 : i32, i32, i32
  }
  func.func @transform_3(%arg0: i32) -> (i32, i32) {
    %c0_i32 = arith.constant 0 : i32
    %c0_i32_0 = arith.constant 0 : i32
    %c0_i32_1 = arith.constant 0 : i32
    return %c0_i32, %c0_i32_0 : i32, i32
  }
  func.func @transform_4(%arg0: i32) -> (i32, i32) {
    %c0_i32 = arith.constant 0 : i32
    %c0_i32_0 = arith.constant 0 : i32
    %c0_i32_1 = arith.constant 0 : i32
    return %c0_i32, %c0_i32_0 : i32, i32
  }
  func.func @transform_5(%arg0: i32) -> (i32, i32, i32) {
    %c0_i32 = arith.constant 0 : i32
    %c0_i32_0 = arith.constant 0 : i32
    %c0_i32_1 = arith.constant 0 : i32
    return %arg0, %c0_i32, %c0_i32_0 : i32, i32, i32
  }
  func.func @transform_6(%arg0: i32) -> (i32, i32, i32) {
    %c0_i32 = arith.constant 0 : i32
    %c0_i32_0 = arith.constant 0 : i32
    %c0_i32_1 = arith.constant 0 : i32
    return %arg0, %c0_i32, %c0_i32_0 : i32, i32, i32
  }
}

</mosaic_0001>

<llo_original>
// kernel: tpu_custom_call.1
$region0: #{tpu_custom_call.1}
  #allocation0 [shape = 'u32[]', space=smem, size = 0x4, offset = 0x4, fixed_abs, tag = 'smem constant byte address 0x4 - core index']
  #allocation1 [shape = 'u32[144,128]{1,0:T(1,128)}', space=vmem, size = 0x12000, scoped, tag = 'internal scratch']
  %s0 = inlined_call_operand.vmem [shape: f32[2,16,3], index: 0, kind: input, shape index: {}]
  %s1 = inlined_call_operand.vmem [shape: f32[2,3,48], index: 1, kind: input, shape index: {}]
  %s2 = inlined_call_operand.vmem [shape: bf16[2,48,8], index: 2, kind: input, shape index: {}]
  %s3 = inlined_call_operand.vmem [shape: bf16[48,48], index: 3, kind: input, shape index: {}]
  %s4 = inlined_call_operand.vmem [shape: bf16[192,128], index: 4, kind: input, shape index: {}]
  %s5 = inlined_call_operand.vmem [shape: f32[2,16,7], index: 5, kind: output, shape index: {0}]
  %s6 = inlined_call_operand.hbm [shape: f32[2,16,32], index: 6, kind: output, shape index: {1}]
  %7 = xla_tuple %s5, %s6
  %s8 = sld [smem:[#allocation0]]
  $region38: #{tpu_custom_call.1} parent=0
    _
  %s10 = ssub.s32 1, %s8
  %s11 = scalar_select 0, %s10, %s8
  $region1: #{tpu_custom_call.1} parent=0
    #allocation2 [shape = 'u8[16384]{0}', space=vmem, size = 0x4000, scoped, tag = 'output window, operand 1, single buffered']
    #allocation3 [shape = 's32[1]{0}', space=sflag, size = 0x4, scoped, tag = 'scoped memory for tpu_custom_call.1']
    %12 = vsyncpa [#allocation3], 0
    // Predicated region
    $region2: #{tpu_custom_call.1} parent=1 // pred_check
      _
    $region3: #{tpu_custom_call.1} parent=1 // pred_check_branch
      %14 = sbr.rel (0) target = $region5
    $region4: #{tpu_custom_call.1} parent=1 // pred_region
      _
    $region5: #{tpu_custom_call.1} parent=1 // pred_fallthru
      _
    // Predicated region
    $region6: #{tpu_custom_call.1} parent=1 // pred_check
      _
    $region7: #{tpu_custom_call.1} parent=1 // pred_check_branch
      %16 = sbr.rel (0) target = $region9
    $region8: #{tpu_custom_call.1} parent=1 // pred_region
      _
    $region9: #{tpu_custom_call.1} parent=1 // pred_fallthru
      _
    // Predicated region
    $region10: #{tpu_custom_call.1} parent=1 // pred_check
      _
    $region11: #{tpu_custom_call.1} parent=1 // pred_check_branch
      %18 = sbr.rel (0) target = $region13
    $region12: #{tpu_custom_call.1} parent=1 // pred_region
      _
    $region13: #{tpu_custom_call.1} parent=1 // pred_fallthru
      _
    // Predicated region
    $region14: #{tpu_custom_call.1} parent=1 // pred_check
      _
    $region15: #{tpu_custom_call.1} parent=1 // pred_check_branch
      %20 = sbr.rel (0) target = $region17
    $region16: #{tpu_custom_call.1} parent=1 // pred_region
      _
    $region17: #{tpu_custom_call.1} parent=1 // pred_fallthru
      _
    // Predicated region
    $region18: #{tpu_custom_call.1} parent=1 // pred_check
      _
    $region19: #{tpu_custom_call.1} parent=1 // pred_check_branch
      %22 = sbr.rel (0) target = $region21
    $region20: #{tpu_custom_call.1} parent=1 // pred_region
      _
    $region21: #{tpu_custom_call.1} parent=1 // pred_fallthru
      _
    %v24 = vld [vmem:[%s3] sm:$0xf]
    %v25 = vld [vmem:[%s3 + $0x4] sm:$0xf]
    %v26 = vld [vmem:[%s3 + $0x8] sm:$0xf]
    %v27 = vld [vmem:[%s3 + $0xc] sm:$0xf]
    %v28 = vld [vmem:[%s3 + $0x10] sm:$0xf]
    %v29 = vld [vmem:[%s3 + $0x14] sm:$0xf]
    %v30 = vld [vmem:[%s0] sm:$0xff]
    %v31 = vld [vmem:[%s0 + $0x8] sm:$0xff]
    %v32 = vld [vmem:[%s1] sm:$0x7]
    %34 = vset.pattern.permute.xlu0 0
    %35 = vperm.xlu0 %34, %v30
    %v36 = vpop.permute.xlu0 %35
    %39 = vset.pattern.permute.xlu0 0
    %40 = vperm.xlu0 %39, %v31
    %v41 = vpop.permute.xlu0 %40
    %v43 = vlaneseq
    %v44 = vshrl.u32 %v43, 7
    %v45 = vsub.s32 0, %v44
    %v46 = vrot.slane %v32, %v45
    %v47 = vsub.f32 %v36, %v46
    %v48 = vsub.f32 %v41, %v46
    %v49 = vmul.f32 %v47, %v47
    %v50 = vmul.f32 %v48, %v48
    %51 = vset.pattern.permute.xlu0 1
    %52 = vperm.xlu0 %51, %v30
    %v53 = vpop.permute.xlu0 %52
    %55 = vset.pattern.permute.xlu0 1
    %56 = vperm.xlu0 %55, %v31
    %v57 = vpop.permute.xlu0 %56
    %v59 = vlaneseq
    %v60 = vshrl.u32 %v59, 7
    %v61 = vsub.s32 1, %v60
    %v62 = vrot.slane %v32, %v61
    %v63 = vsub.f32 %v53, %v62
    %v64 = vsub.f32 %v57, %v62
    %v65 = vmul.f32 %v63, %v63
    %v66 = vmul.f32 %v64, %v64
    %v67 = vadd.f32 %v49, %v65
    %v68 = vadd.f32 %v50, %v66
    %69 = vset.pattern.permute.xlu0 2
    %70 = vperm.xlu0 %69, %v30
    %v71 = vpop.permute.xlu0 %70
    %73 = vset.pattern.permute.xlu0 2
    %74 = vperm.xlu0 %73, %v31
    %v75 = vpop.permute.xlu0 %74
    %v77 = vlaneseq
    %v78 = vshrl.u32 %v77, 7
    %v79 = vsub.s32 2, %v78
    %v80 = vrot.slane %v32, %v79
    %v81 = vsub.f32 %v71, %v80
    %v82 = vsub.f32 %v75, %v80
    %v83 = vmul.f32 %v81, %v81
    %v84 = vmul.f32 %v82, %v82
    %v85 = vadd.f32 %v67, %v83
    %v86 = vadd.f32 %v68, %v84
    %vm87 = vcmp.lt.f32.partialorder %v85, 1.0
    %vm88 = vcmp.lt.f32.partialorder %v86, 1.0
    %v89 = vsel %vm87, 1, 0
    %v90 = vsel %vm88, 1, 0
    %v91 = vcvt.s32.f32 %v89
    %v92 = vcvt.s32.f32 %v90
    %v93 = vpack.c.bf16 %v92, %v91
    %v100 = vunpack.c.l.b16 %v24
    %v101 = vunpack.c.l.b16 %v25
    %v102 = vunpack.c.l.b16 %v26
    %v103 = vunpack.c.l.b16 %v27
    %v104 = vunpack.c.l.b16 %v28
    %v105 = vunpack.c.l.b16 %v29
    %v106 = vpack.c.b16 %v101, %v100
    %v107 = vpack.c.b16 %v103, %v102
    %v108 = vpack.c.b16 %v105, %v104
    %vm112 = vcmask 392192
    %v114 = vsel %vm112, %v93, 0
    %116 = vmatprep.subr.bf16.mxu0 0
    %117 = vmatpush1.bf16.msra.mxu0 %v106
    %118 = vmatprep.subr.bf16.mxu0 0
    %119 = vmatpush1.bf16.msra.mxu0 %v107
    %120 = vmatprep.subr.bf16.mxu0 0
    %121 = vmatpush1.bf16.msra.mxu0 %v108
    %122 = vmatprep.subr.bf16.mxu0 0
    %123 = vmatpush1.bf16.msra.mxu0 0
    %124 = vmatprep.subr.bf16.mxu0 0
    %125 = vmatpush1.bf16.msra.mxu0 0
    %126 = vmatprep.subr.bf16.mxu0 0
    %127 = vmatpush1.bf16.msra.mxu0 0
    %128 = vmatprep.subr.bf16.mxu0 0
    %129 = vmatpush1.bf16.msra.mxu0 0
    %130 = vmatprep.subr.bf16.mxu0 0
    %131 = vmatpush1.bf16.msra.mxu0 0
    %132 = vmatprep.subr.bf16.mxu0 0
    %133 = vmatpush1.bf16.msra.mxu0 0
    %134 = vmatprep.subr.bf16.mxu0 0
    %135 = vmatpush1.bf16.msra.mxu0 0
    %136 = vmatprep.subr.bf16.mxu0 0
    %137 = vmatpush1.bf16.msra.mxu0 0
    %138 = vmatprep.subr.bf16.mxu0 0
    %139 = vmatpush1.bf16.msra.mxu0 0
    %140 = vmatprep.subr.bf16.mxu0 0
    %141 = vmatpush1.bf16.msra.mxu0 0
    %142 = vmatprep.subr.bf16.mxu0 0
    %143 = vmatpush1.bf16.msra.mxu0 0
    %144 = vmatprep.subr.bf16.mxu0 0
    %145 = vmatpush1.bf16.msra.mxu0 0
    %146 = vmatprep.subr.bf16.mxu0 0
    %147 = vmatpush1.bf16.msra.mxu0 0
    %148 = vmatprep.mubr.bf16.mxu0 0
    %149 = vmatmul.mubr.bf16.gmra.mrb[0].mxu0 %v114
    %v150 = vpop.f32.mrb[0].mxu0
    %v151 = vadd.f32 0.0, %v150
    %v152 = vpop.f32.mrb[0].mxu0
    %v153 = vpop.f32.mrb[0].mxu0
    %v154 = vadd.f32 0.0, %v153
    %v155 = vpop.f32.mrb[0].mxu0
    %156 = vdwg.mxu0
    %vm157 = vcmp.eq.f32.partialorder %v151, 1.0
    %vm158 = vcmp.eq.f32.partialorder %v154, 1.0
    %vm159 = vmand %vm87, %vm157
    %vm160 = vmand %vm88, %vm158
    %v161 = vsel %vm159, 1.0, 0.0
    %v162 = vsel %vm160, 1.0, 0.0
    %vm163 = vcmp.eq.f32.partialorder %v151, 2.0
    %vm164 = vcmp.eq.f32.partialorder %v154, 2.0
    %vm165 = vmand %vm87, %vm163
    %vm166 = vmand %vm88, %vm164
    %v167 = vsel %vm165, 1.0, 0.0
    %v168 = vsel %vm166, 1.0, 0.0
    %vm169 = vcmp.ge.f32.partialorder %v151, 2.0
    %vm170 = vcmp.ge.f32.partialorder %v154, 2.0
    %v171 = vsel %vm169, 1, 0
    %v172 = vsel %vm170, 1, 0
    %173 = vset.pattern.permute.xlu0 47
    %174 = vperm.xlu0 %173, %v171
    %v175 = vpop.permute.xlu0 %174
    %176 = vset.pattern.permute.xlu0 47
    %177 = vperm.xlu0 %176, %v172
    %v178 = vpop.permute.xlu0 %177
    %vm179 = vcmp.eq.s32.totalorder %v175, 1
    %vm180 = vcmp.eq.s32.totalorder %v178, 1
    %v181 = vsel %vm179, %v167, %v161
    %v182 = vsel %vm180, %v168, %v162
    %vm183 = vcmp.eq.f32.partialorder %v151, 3.0
    %vm184 = vcmp.eq.f32.partialorder %v154, 3.0
    %vm185 = vmand %vm87, %vm183
    %vm186 = vmand %vm88, %vm184
    %v187 = vsel %vm185, 1.0, 0.0
    %v188 = vsel %vm186, 1.0, 0.0
    %vm189 = vcmp.ge.f32.partialorder %v151, 3.0
    %vm190 = vcmp.ge.f32.partialorder %v154, 3.0
    %v191 = vsel %vm189, 1, 0
    %v192 = vsel %vm190, 1, 0
    %193 = vset.pattern.permute.xlu0 47
    %194 = vperm.xlu0 %193, %v191
    %v195 = vpop.permute.xlu0 %194
    %196 = vset.pattern.permute.xlu0 47
    %197 = vperm.xlu0 %196, %v192
    %v198 = vpop.permute.xlu0 %197
    %vm199 = vcmp.eq.s32.totalorder %v195, 1
    %vm200 = vcmp.eq.s32.totalorder %v198, 1
    %v201 = vsel %vm199, %v187, %v161
    %v202 = vsel %vm200, %v188, %v162
    %vm203 = vcmp.eq.f32.partialorder %v151, 4.0
    %vm204 = vcmp.eq.f32.partialorder %v154, 4.0
    %vm205 = vmand %vm87, %vm203
    %vm206 = vmand %vm88, %vm204
    %v207 = vsel %vm205, 1.0, 0.0
    %v208 = vsel %vm206, 1.0, 0.0
    %vm209 = vcmp.ge.f32.partialorder %v151, 4.0
    %vm210 = vcmp.ge.f32.partialorder %v154, 4.0
    %v211 = vsel %vm209, 1, 0
    %v212 = vsel %vm210, 1, 0
    %213 = vset.pattern.permute.xlu0 47
    %214 = vperm.xlu0 %213, %v211
    %v215 = vpop.permute.xlu0 %214
    %216 = vset.pattern.permute.xlu0 47
    %217 = vperm.xlu0 %216, %v212
    %v218 = vpop.permute.xlu0 %217
    %vm219 = vcmp.eq.s32.totalorder %v215, 1
    %vm220 = vcmp.eq.s32.totalorder %v218, 1
    %v221 = vsel %vm219, %v207, %v161
    %v222 = vsel %vm220, %v208, %v162
    %v223 = vpack.c.bf16 %v162, %v161
    %v224 = vpack.c.bf16 %v182, %v181
    %v225 = vpack.c.bf16 %v202, %v201
    %v226 = vpack.c.bf16 %v222, %v221
    %v227 = vld [vmem:[%s2] sm:$0xf]
    %v228 = vld [vmem:[%s2 + $0x4] sm:$0xf]
    %v229 = vld [vmem:[%s2 + $0x8] sm:$0xf]
    %v230 = vld [vmem:[%s2 + $0xc] sm:$0xf]
    %v231 = vld [vmem:[%s2 + $0x10] sm:$0xf]
    %v232 = vld [vmem:[%s2 + $0x14] sm:$0xf]
    %v239 = vunpack.c.l.b16 %v227
    %v240 = vunpack.c.l.b16 %v228
    %v241 = vunpack.c.l.b16 %v229
    %v242 = vunpack.c.l.b16 %v230
    %v243 = vunpack.c.l.b16 %v231
    %v244 = vunpack.c.l.b16 %v232
    %v245 = vpack.c.b16 %v240, %v239
    %v246 = vpack.c.b16 %v242, %v241
    %v247 = vpack.c.b16 %v244, %v243
    %v252 = vsel %vm112, %v223, 0
    %v255 = vsel %vm112, %v224, 0
    %v258 = vsel %vm112, %v225, 0
    %v261 = vsel %vm112, %v226, 0
    %263 = vmatprep.subr.bf16.mxu0 0
    %264 = vmatpush1.bf16.msra.mxu0 %v245
    %265 = vmatprep.subr.bf16.mxu0 0
    %266 = vmatpush1.bf16.msra.mxu0 %v246
    %267 = vmatprep.subr.bf16.mxu0 0
    %268 = vmatpush1.bf16.msra.mxu0 %v247
    %269 = vmatprep.subr.bf16.mxu0 0
    %270 = vmatpush1.bf16.msra.mxu0 0
    %271 = vmatprep.subr.bf16.mxu0 0
    %272 = vmatpush1.bf16.msra.mxu0 0
    %273 = vmatprep.subr.bf16.mxu0 0
    %274 = vmatpush1.bf16.msra.mxu0 0
    %275 = vmatprep.subr.bf16.mxu0 0
    %276 = vmatpush1.bf16.msra.mxu0 0
    %277 = vmatprep.subr.bf16.mxu0 0
    %278 = vmatpush1.bf16.msra.mxu0 0
    %279 = vmatprep.subr.bf16.mxu0 0
    %280 = vmatpush1.bf16.msra.mxu0 0
    %281 = vmatprep.subr.bf16.mxu0 0
    %282 = vmatpush1.bf16.msra.mxu0 0
    %283 = vmatprep.subr.bf16.mxu0 0
    %284 = vmatpush1.bf16.msra.mxu0 0
    %285 = vmatprep.subr.bf16.mxu0 0
    %286 = vmatpush1.bf16.msra.mxu0 0
    %287 = vmatprep.subr.bf16.mxu0 0
    %288 = vmatpush1.bf16.msra.mxu0 0
    %289 = vmatprep.subr.bf16.mxu0 0
    %290 = vmatpush1.bf16.msra.mxu0 0
    %291 = vmatprep.subr.bf16.mxu0 0
    %292 = vmatpush1.bf16.msra.mxu0 0
    %293 = vmatprep.subr.bf16.mxu0 0
    %294 = vmatpush1.bf16.msra.mxu0 0
    %295 = vmatprep.mubr.bf16.mxu0 0
    %296 = vmatmul.mubr.bf16.gmra.mrb[0].mxu0 %v252
    %v297 = vpop.f32.mrb[0].mxu0
    %v298 = vadd.f32 0.0, %v297
    %v299 = vpop.f32.mrb[0].mxu0
    %v300 = vpop.f32.mrb[0].mxu0
    %v301 = vadd.f32 0.0, %v300
    %v302 = vpop.f32.mrb[0].mxu0
    %303 = vmatprep.mubr.bf16.mxu0 0
    %304 = vmatmul.mubr.bf16.gmra.mrb[0].mxu0 %v255
    %v305 = vpop.f32.mrb[0].mxu0
    %v306 = vadd.f32 0.0, %v305
    %v307 = vpop.f32.mrb[0].mxu0
    %v308 = vpop.f32.mrb[0].mxu0
    %v309 = vadd.f32 0.0, %v308
    %v310 = vpop.f32.mrb[0].mxu0
    %311 = vmatprep.mubr.bf16.mxu0 0
    %312 = vmatmul.mubr.bf16.gmra.mrb[0].mxu0 %v258
    %v313 = vpop.f32.mrb[0].mxu0
    %v314 = vadd.f32 0.0, %v313
    %v315 = vpop.f32.mrb[0].mxu0
    %v316 = vpop.f32.mrb[0].mxu0
    %v317 = vadd.f32 0.0, %v316
    %v318 = vpop.f32.mrb[0].mxu0
    %319 = vmatprep.mubr.bf16.mxu0 0
    %320 = vmatmul.mubr.bf16.gmra.mrb[0].mxu0 %v261
    %v321 = vpop.f32.mrb[0].mxu0
    %v322 = vadd.f32 0.0, %v321
    %v323 = vpop.f32.mrb[0].mxu0
    %v324 = vpop.f32.mrb[0].mxu0
    %v325 = vadd.f32 0.0, %v324
    %v326 = vpop.f32.mrb[0].mxu0
    %327 = vdwg.mxu0
    %s328 = scalar_lea.vmem %s0, 16
    %v329 = vld [vmem:[%s328] sm:$0xff]
    %v330 = vld [vmem:[%s328 + $0x8] sm:$0xff]
    %s331 = scalar_lea.vmem %s1, 4
    %v332 = vld [vmem:[%s331] sm:$0x7]
    %334 = vset.pattern.permute.xlu0 0
    %335 = vperm.xlu0 %334, %v329
    %v336 = vpop.permute.xlu0 %335
    %339 = vset.pattern.permute.xlu0 0
    %340 = vperm.xlu0 %339, %v330
    %v341 = vpop.permute.xlu0 %340
    %v343 = vlaneseq
    %v344 = vshrl.u32 %v343, 7
    %v345 = vsub.s32 0, %v344
    %v346 = vrot.slane %v332, %v345
    %v347 = vsub.f32 %v336, %v346
    %v348 = vsub.f32 %v341, %v346
    %v349 = vmul.f32 %v347, %v347
    %v350 = vmul.f32 %v348, %v348
    %351 = vset.pattern.permute.xlu0 1
    %352 = vperm.xlu0 %351, %v329
    %v353 = vpop.permute.xlu0 %352
    %355 = vset.pattern.permute.xlu0 1
    %356 = vperm.xlu0 %355, %v330
    %v357 = vpop.permute.xlu0 %356
    %v359 = vlaneseq
    %v360 = vshrl.u32 %v359, 7
    %v361 = vsub.s32 1, %v360
    %v362 = vrot.slane %v332, %v361
    %v363 = vsub.f32 %v353, %v362
    %v364 = vsub.f32 %v357, %v362
    %v365 = vmul.f32 %v363, %v363
    %v366 = vmul.f32 %v364, %v364
    %v367 = vadd.f32 %v349, %v365
    %v368 = vadd.f32 %v350, %v366
    %369 = vset.pattern.permute.xlu0 2
    %370 = vperm.xlu0 %369, %v329
    %v371 = vpop.permute.xlu0 %370
    %373 = vset.pattern.permute.xlu0 2
    %374 = vperm.xlu0 %373, %v330
    %v375 = vpop.permute.xlu0 %374
    %v377 = vlaneseq
    %v378 = vshrl.u32 %v377, 7
    %v379 = vsub.s32 2, %v378
    %v380 = vrot.slane %v332, %v379
    %v381 = vsub.f32 %v371, %v380
    %v382 = vsub.f32 %v375, %v380
    %v383 = vmul.f32 %v381, %v381
    %v384 = vmul.f32 %v382, %v382
    %v385 = vadd.f32 %v367, %v383
    %v386 = vadd.f32 %v368, %v384
    %vm387 = vcmp.lt.f32.partialorder %v385, 1.0
    %vm388 = vcmp.lt.f32.partialorder %v386, 1.0
    %v389 = vsel %vm387, 1, 0
    %v390 = vsel %vm388, 1, 0
    %v391 = vcvt.s32.f32 %v389
    %v392 = vcvt.s32.f32 %v390
    %v393 = vpack.c.bf16 %v392, %v391
    %v395 = vsel %vm112, %v393, 0
    %397 = vmatprep.subr.bf16.mxu0 0
    %398 = vmatpush1.bf16.msra.mxu0 %v106
    %399 = vmatprep.subr.bf16.mxu0 0
    %400 = vmatpush1.bf16.msra.mxu0 %v107
    %401 = vmatprep.subr.bf16.mxu0 0
    %402 = vmatpush1.bf16.msra.mxu0 %v108
    %403 = vmatprep.subr.bf16.mxu0 0
    %404 = vmatpush1.bf16.msra.mxu0 0
    %405 = vmatprep.subr.bf16.mxu0 0
    %406 = vmatpush1.bf16.msra.mxu0 0
    %407 = vmatprep.subr.bf16.mxu0 0
    %408 = vmatpush1.bf16.msra.mxu0 0
    %409 = vmatprep.subr.bf16.mxu0 0
    %410 = vmatpush1.bf16.msra.mxu0 0
    %411 = vmatprep.subr.bf16.mxu0 0
    %412 = vmatpush1.bf16.msra.mxu0 0
    %413 = vmatprep.subr.bf16.mxu0 0
    %414 = vmatpush1.bf16.msra.mxu0 0
    %415 = vmatprep.subr.bf16.mxu0 0
    %416 = vmatpush1.bf16.msra.mxu0 0
    %417 = vmatprep.subr.bf16.mxu0 0
    %418 = vmatpush1.bf16.msra.mxu0 0
    %419 = vmatprep.subr.bf16.mxu0 0
    %420 = vmatpush1.bf16.msra.mxu0 0
    %421 = vmatprep.subr.bf16.mxu0 0
    %422 = vmatpush1.bf16.msra.mxu0 0
    %423 = vmatprep.subr.bf16.mxu0 0
    %424 = vmatpush1.bf16.msra.mxu0 0
    %425 = vmatprep.subr.bf16.mxu0 0
    %426 = vmatpush1.bf16.msra.mxu0 0
    %427 = vmatprep.subr.bf16.mxu0 0
    %428 = vmatpush1.bf16.msra.mxu0 0
    %429 = vmatprep.mubr.bf16.mxu0 0
    %430 = vmatmul.mubr.bf16.gmra.mrb[0].mxu0 %v395
    %v431 = vpop.f32.mrb[0].mxu0
    %v432 = vadd.f32 0.0, %v431
    %v433 = vpop.f32.mrb[0].mxu0
    %v434 = vpop.f32.mrb[0].mxu0
    %v435 = vadd.f32 0.0, %v434
    %v436 = vpop.f32.mrb[0].mxu0
    %437 = vdwg.mxu0
    %vm438 = vcmp.eq.f32.partialorder %v432, 1.0
    %vm439 = vcmp.eq.f32.partialorder %v435, 1.0
    %vm440 = vmand %vm387, %vm438
    %vm441 = vmand %vm388, %vm439
    %v442 = vsel %vm440, 1.0, 0.0
    %v443 = vsel %vm441, 1.0, 0.0
    %vm444 = vcmp.eq.f32.partialorder %v432, 2.0
    %vm445 = vcmp.eq.f32.partialorder %v435, 2.0
    %vm446 = vmand %vm387, %vm444
    %vm447 = vmand %vm388, %vm445
    %v448 = vsel %vm446, 1.0, 0.0
    %v449 = vsel %vm447, 1.0, 0.0
    %vm450 = vcmp.ge.f32.partialorder %v432, 2.0
    %vm451 = vcmp.ge.f32.partialorder %v435, 2.0
    %v452 = vsel %vm450, 1, 0
    %v453 = vsel %vm451, 1, 0
    %454 = vset.pattern.permute.xlu0 47
    %455 = vperm.xlu0 %454, %v452
    %v456 = vpop.permute.xlu0 %455
    %457 = vset.pattern.permute.xlu0 47
    %458 = vperm.xlu0 %457, %v453
    %v459 = vpop.permute.xlu0 %458
    %vm460 = vcmp.eq.s32.totalorder %v456, 1
    %vm461 = vcmp.eq.s32.totalorder %v459, 1
    %v462 = vsel %vm460, %v448, %v442
    %v463 = vsel %vm461, %v449, %v443
    %vm464 = vcmp.eq.f32.partialorder %v432, 3.0
    %vm465 = vcmp.eq.f32.partialorder %v435, 3.0
    %vm466 = vmand %vm387, %vm464
    %vm467 = vmand %vm388, %vm465
    %v468 = vsel %vm466, 1.0, 0.0
    %v469 = vsel %vm467, 1.0, 0.0
    %vm470 = vcmp.ge.f32.partialorder %v432, 3.0
    %vm471 = vcmp.ge.f32.partialorder %v435, 3.0
    %v472 = vsel %vm470, 1, 0
    %v473 = vsel %vm471, 1, 0
    %474 = vset.pattern.permute.xlu0 47
    %475 = vperm.xlu0 %474, %v472
    %v476 = vpop.permute.xlu0 %475
    %477 = vset.pattern.permute.xlu0 47
    %478 = vperm.xlu0 %477, %v473
    %v479 = vpop.permute.xlu0 %478
    %vm480 = vcmp.eq.s32.totalorder %v476, 1
    %vm481 = vcmp.eq.s32.totalorder %v479, 1
    %v482 = vsel %vm480, %v468, %v442
    %v483 = vsel %vm481, %v469, %v443
    %vm484 = vcmp.eq.f32.partialorder %v432, 4.0
    %vm485 = vcmp.eq.f32.partialorder %v435, 4.0
    %vm486 = vmand %vm387, %vm484
    %vm487 = vmand %vm388, %vm485
    %v488 = vsel %vm486, 1.0, 0.0
    %v489 = vsel %vm487, 1.0, 0.0
    %vm490 = vcmp.ge.f32.partialorder %v432, 4.0
    %vm491 = vcmp.ge.f32.partialorder %v435, 4.0
    %v492 = vsel %vm490, 1, 0
    %v493 = vsel %vm491, 1, 0
    %494 = vset.pattern.permute.xlu0 47
    %495 = vperm.xlu0 %494, %v492
    %v496 = vpop.permute.xlu0 %495
    %497 = vset.pattern.permute.xlu0 47
    %498 = vperm.xlu0 %497, %v493
    %v499 = vpop.permute.xlu0 %498
    %vm500 = vcmp.eq.s32.totalorder %v496, 1
    %vm501 = vcmp.eq.s32.totalorder %v499, 1
    %v502 = vsel %vm500, %v488, %v442
    %v503 = vsel %vm501, %v489, %v443
    %v504 = vpack.c.bf16 %v443, %v442
    %v505 = vpack.c.bf16 %v463, %v462
    %v506 = vpack.c.bf16 %v483, %v482
    %v507 = vpack.c.bf16 %v503, %v502
    %s508 = scalar_lea.vmem %s2, 24
    %v509 = vld [vmem:[%s508] sm:$0xf]
    %v510 = vld [vmem:[%s508 + $0x4] sm:$0xf]
    %v511 = vld [vmem:[%s508 + $0x8] sm:$0xf]
    %v512 = vld [vmem:[%s508 + $0xc] sm:$0xf]
    %v513 = vld [vmem:[%s508 + $0x10] sm:$0xf]
    %v514 = vld [vmem:[%s508 + $0x14] sm:$0xf]
    %v521 = vunpack.c.l.b16 %v509
    %v522 = vunpack.c.l.b16 %v510
    %v523 = vunpack.c.l.b16 %v511
    %v524 = vunpack.c.l.b16 %v512
    %v525 = vunpack.c.l.b16 %v513
    %v526 = vunpack.c.l.b16 %v514
    %v527 = vpack.c.b16 %v522, %v521
    %v528 = vpack.c.b16 %v524, %v523
    %v529 = vpack.c.b16 %v526, %v525
    %v534 = vsel %vm112, %v504, 0
    %v537 = vsel %vm112, %v505, 0
    %v540 = vsel %vm112, %v506, 0
    %v543 = vsel %vm112, %v507, 0
    %545 = vmatprep.subr.bf16.mxu0 0
    %546 = vmatpush1.bf16.msra.mxu0 %v527
    %547 = vmatprep.subr.bf16.mxu0 0
    %548 = vmatpush1.bf16.msra.mxu0 %v528
    %549 = vmatprep.subr.bf16.mxu0 0
    %550 = vmatpush1.bf16.msra.mxu0 %v529
    %551 = vmatprep.subr.bf16.mxu0 0
    %552 = vmatpush1.bf16.msra.mxu0 0
    %553 = vmatprep.subr.bf16.mxu0 0
    %554 = vmatpush1.bf16.msra.mxu0 0
    %555 = vmatprep.subr.bf16.mxu0 0
    %556 = vmatpush1.bf16.msra.mxu0 0
    %557 = vmatprep.subr.bf16.mxu0 0
    %558 = vmatpush1.bf16.msra.mxu0 0
    %559 = vmatprep.subr.bf16.mxu0 0
    %560 = vmatpush1.bf16.msra.mxu0 0
    %561 = vmatprep.subr.bf16.mxu0 0
    %562 = vmatpush1.bf16.msra.mxu0 0
    %563 = vmatprep.subr.bf16.mxu0 0
    %564 = vmatpush1.bf16.msra.mxu0 0
    %565 = vmatprep.subr.bf16.mxu0 0
    %566 = vmatpush1.bf16.msra.mxu0 0
    %567 = vmatprep.subr.bf16.mxu0 0
    %568 = vmatpush1.bf16.msra.mxu0 0
    %569 = vmatprep.subr.bf16.mxu0 0
    %570 = vmatpush1.bf16.msra.mxu0 0
    %571 = vmatprep.subr.bf16.mxu0 0
    %572 = vmatpush1.bf16.msra.mxu0 0
    %573 = vmatprep.subr.bf16.mxu0 0
    %574 = vmatpush1.bf16.msra.mxu0 0
    %575 = vmatprep.subr.bf16.mxu0 0
    %576 = vmatpush1.bf16.msra.mxu0 0
    %577 = vmatprep.mubr.bf16.mxu0 0
    %578 = vmatmul.mubr.bf16.gmra.mrb[0].mxu0 %v534
    %v579 = vpop.f32.mrb[0].mxu0
    %v580 = vadd.f32 0.0, %v579
    %v581 = vpop.f32.mrb[0].mxu0
    %v582 = vpop.f32.mrb[0].mxu0
    %v583 = vadd.f32 0.0, %v582
    %v584 = vpop.f32.mrb[0].mxu0
    %585 = vmatprep.mubr.bf16.mxu0 0
    %586 = vmatmul.mubr.bf16.gmra.mrb[0].mxu0 %v537
    %v587 = vpop.f32.mrb[0].mxu0
    %v588 = vadd.f32 0.0, %v587
    %v589 = vpop.f32.mrb[0].mxu0
    %v590 = vpop.f32.mrb[0].mxu0
    %v591 = vadd.f32 0.0, %v590
    %v592 = vpop.f32.mrb[0].mxu0
    %593 = vmatprep.mubr.bf16.mxu0 0
    %594 = vmatmul.mubr.bf16.gmra.mrb[0].mxu0 %v540
    %v595 = vpop.f32.mrb[0].mxu0
    %v596 = vadd.f32 0.0, %v595
    %v597 = vpop.f32.mrb[0].mxu0
    %v598 = vpop.f32.mrb[0].mxu0
    %v599 = vadd.f32 0.0, %v598
    %v600 = vpop.f32.mrb[0].mxu0
    %601 = vmatprep.mubr.bf16.mxu0 0
    %602 = vmatmul.mubr.bf16.gmra.mrb[0].mxu0 %v543
    %v603 = vpop.f32.mrb[0].mxu0
    %v604 = vadd.f32 0.0, %v603
    %v605 = vpop.f32.mrb[0].mxu0
    %v606 = vpop.f32.mrb[0].mxu0
    %v607 = vadd.f32 0.0, %v606
    %v608 = vpop.f32.mrb[0].mxu0
    %609 = vdwg.mxu0
    %v610 = vld [vmem:[%s4] sm:$0xf]
    %v611 = vld [vmem:[%s4 + $0x8] sm:$0x1]
    %v612 = vpack.c.bf16 %v301, %v298
    %v613 = vpack.c.bf16 %v309, %v306
    %v614 = vpack.c.bf16 %v317, %v314
    %v615 = vpack.c.bf16 %v325, %v322
    %v616 = vpack.c.bf16 %v583, %v580
    %v617 = vpack.c.bf16 %v591, %v588
    %v618 = vpack.c.bf16 %v599, %v596
    %v619 = vpack.c.bf16 %v607, %v604
    %v620 = vunpack.c.l.bf16 %v611
    %v621 = vlaneseq
    %v622 = vshrl.u32 %v621, 7
    %v623 = vsub.s32 0, %v622
    %v624 = vrot.slane %v620, %v623
    %vm625 = vcmask 64512
    %v627 = vsel %vm625, %v612, 0
    %v630 = vsel %vm625, %v613, 0
    %v633 = vsel %vm625, %v614, 0
    %v636 = vsel %vm625, %v615, 0
    %v639 = vsel %vm625, %v616, 0
    %v642 = vsel %vm625, %v617, 0
    %v645 = vsel %vm625, %v618, 0
    %v648 = vsel %vm625, %v619, 0
    %vm650 = vcmask 1043456
    %v652 = vsel %vm650, %v610, 0
    %654 = vmatprep.subr.bf16.mxu0 0
    %655 = vmatpush1.bf16.msra.mxu0 %v652
    %656 = vmatprep.subr.bf16.mxu0 0
    %657 = vmatpush1.bf16.msra.mxu0 0
    %658 = vmatprep.subr.bf16.mxu0 0
    %659 = vmatpush1.bf16.msra.mxu0 0
    %660 = vmatprep.subr.bf16.mxu0 0
    %661 = vmatpush1.bf16.msra.mxu0 0
    %662 = vmatprep.subr.bf16.mxu0 0
    %663 = vmatpush1.bf16.msra.mxu0 0
    %664 = vmatprep.subr.bf16.mxu0 0
    %665 = vmatpush1.bf16.msra.mxu0 0
    %666 = vmatprep.subr.bf16.mxu0 0
    %667 = vmatpush1.bf16.msra.mxu0 0
    %668 = vmatprep.subr.bf16.mxu0 0
    %669 = vmatpush1.bf16.msra.mxu0 0
    %670 = vmatprep.subr.bf16.mxu0 0
    %671 = vmatpush1.bf16.msra.mxu0 0
    %672 = vmatprep.subr.bf16.mxu0 0
    %673 = vmatpush1.bf16.msra.mxu0 0
    %674 = vmatprep.subr.bf16.mxu0 0
    %675 = vmatpush1.bf16.msra.mxu0 0
    %676 = vmatprep.subr.bf16.mxu0 0
    %677 = vmatpush1.bf16.msra.mxu0 0
    %678 = vmatprep.subr.bf16.mxu0 0
    %679 = vmatpush1.bf16.msra.mxu0 0
    %680 = vmatprep.subr.bf16.mxu0 0
    %681 = vmatpush1.bf16.msra.mxu0 0
    %682 = vmatprep.subr.bf16.mxu0 0
    %683 = vmatpush1.bf16.msra.mxu0 0
    %684 = vmatprep.subr.bf16.mxu0 0
    %685 = vmatpush1.bf16.msra.mxu0 0
    %686 = vmatprep.mubr.bf16.mxu0 0
    %687 = vmatmul.mubr.bf16.gmra.mrb[0].mxu0 %v627
    %v688 = vpop.f32.mrb[0].mxu0
    %v689 = vadd.f32 %v624, %v688
    %v690 = vpop.f32.mrb[0].mxu0
    %v691 = vpop.f32.mrb[0].mxu0
    %v692 = vadd.f32 %v624, %v691
    %v693 = vpop.f32.mrb[0].mxu0
    %694 = vmatprep.mubr.bf16.mxu0 0
    %695 = vmatmul.mubr.bf16.gmra.mrb[0].mxu0 %v630
    %v696 = vpop.f32.mrb[0].mxu0
    %v697 = vadd.f32 %v624, %v696
    %v698 = vpop.f32.mrb[0].mxu0
    %v699 = vpop.f32.mrb[0].mxu0
    %v700 = vadd.f32 %v624, %v699
    %v701 = vpop.f32.mrb[0].mxu0
    %702 = vmatprep.mubr.bf16.mxu0 0
    %703 = vmatmul.mubr.bf16.gmra.mrb[0].mxu0 %v633
    %v704 = vpop.f32.mrb[0].mxu0
    %v705 = vadd.f32 %v624, %v704
    %v706 = vpop.f32.mrb[0].mxu0
    %v707 = vpop.f32.mrb[0].mxu0
    %v708 = vadd.f32 %v624, %v707
    %v709 = vpop.f32.mrb[0].mxu0
    %710 = vmatprep.mubr.bf16.mxu0 0
    %711 = vmatmul.mubr.bf16.gmra.mrb[0].mxu0 %v636
    %v712 = vpop.f32.mrb[0].mxu0
    %v713 = vadd.f32 %v624, %v712
    %v714 = vpop.f32.mrb[0].mxu0
    %v715 = vpop.f32.mrb[0].mxu0
    %v716 = vadd.f32 %v624, %v715
    %v717 = vpop.f32.mrb[0].mxu0
    %718 = vmatprep.mubr.bf16.mxu0 0
    %719 = vmatmul.mubr.bf16.gmra.mrb[0].mxu0 %v639
    %v720 = vpop.f32.mrb[0].mxu0
    %v721 = vadd.f32 %v624, %v720
    %v722 = vpop.f32.mrb[0].mxu0
    %v723 = vpop.f32.mrb[0].mxu0
    %v724 = vadd.f32 %v624, %v723
    %v725 = vpop.f32.mrb[0].mxu0
    %726 = vmatprep.mubr.bf16.mxu0 0
    %727 = vmatmul.mubr.bf16.gmra.mrb[0].mxu0 %v642
    %v728 = vpop.f32.mrb[0].mxu0
    %v729 = vadd.f32 %v624, %v728
    %v730 = vpop.f32.mrb[0].mxu0
    %v731 = vpop.f32.mrb[0].mxu0
    %v732 = vadd.f32 %v624, %v731
    %v733 = vpop.f32.mrb[0].mxu0
    %734 = vmatprep.mubr.bf16.mxu0 0
    %735 = vmatmul.mubr.bf16.gmra.mrb[0].mxu0 %v645
    %v736 = vpop.f32.mrb[0].mxu0
    %v737 = vadd.f32 %v624, %v736
    %v738 = vpop.f32.mrb[0].mxu0
    %v739 = vpop.f32.mrb[0].mxu0
    %v740 = vadd.f32 %v624, %v739
    %v741 = vpop.f32.mrb[0].mxu0
    %742 = vmatprep.mubr.bf16.mxu0 0
    %743 = vmatmul.mubr.bf16.gmra.mrb[0].mxu0 %v648
    %v744 = vpop.f32.mrb[0].mxu0
    %v745 = vadd.f32 %v624, %v744
    %v746 = vpop.f32.mrb[0].mxu0
    %v747 = vpop.f32.mrb[0].mxu0
    %v748 = vadd.f32 %v624, %v747
    %v749 = vpop.f32.mrb[0].mxu0
    %750 = vdwg.mxu0
    %v751 = vmax.f32 %v689, %v697
    %v752 = vmax.f32 %v692, %v700
    %v753 = vmax.f32 %v751, %v705
    %v754 = vmax.f32 %v752, %v708
    %v755 = vmax.f32 %v753, %v713
    %v756 = vmax.f32 %v754, %v716
    %v757 = vmax.f32 %v721, %v729
    %v758 = vmax.f32 %v724, %v732
    %v759 = vmax.f32 %v757, %v737
    %v760 = vmax.f32 %v758, %v740
    %v761 = vmax.f32 %v759, %v745
    %v762 = vmax.f32 %v760, %v748
    %v763 = vld [vmem:[%s4 + $0x10] sm:$0xf]
    %v764 = vld [vmem:[%s4 + $0x14] sm:$0xf]
    %v765 = vld [vmem:[%s4 + $0x18] sm:$0xf]
    %v766 = vld [vmem:[%s4 + $0x1c] sm:$0xf]
    %v767 = vld [vmem:[%s4 + $0x20] sm:$0x1]
    %v768 = vpack.c.bf16 %v756, %v755
    %v769 = vpack.c.bf16 %v762, %v761
    %v770 = vunpack.c.l.bf16 %v767
    %v771 = vlaneseq
    %v772 = vshrl.u32 %v771, 7
    %v773 = vsub.s32 0, %v772
    %v774 = vrot.slane %v770, %v773
    %v779 = vunpack.c.l.b16 %v763
    %v780 = vunpack.c.l.b16 %v764
    %v781 = vunpack.c.l.b16 %v765
    %v782 = vunpack.c.l.b16 %v766
    %v783 = vpack.c.b16 %v780, %v779
    %v784 = vpack.c.b16 %v782, %v781
    %vm787 = vcmask 261120
    %v789 = vsel %vm787, %v768, 0
    %v792 = vsel %vm787, %v769, 0
    %794 = vmatprep.subr.bf16.mxu0 0
    %795 = vmatpush1.bf16.msra.mxu0 %v783
    %796 = vmatprep.subr.bf16.mxu0 0
    %797 = vmatpush1.bf16.msra.mxu0 %v784
    %798 = vmatprep.subr.bf16.mxu0 0
    %799 = vmatpush1.bf16.msra.mxu0 0
    %800 = vmatprep.subr.bf16.mxu0 0
    %801 = vmatpush1.bf16.msra.mxu0 0
    %802 = vmatprep.subr.bf16.mxu0 0
    %803 = vmatpush1.bf16.msra.mxu0 0
    %804 = vmatprep.subr.bf16.mxu0 0
    %805 = vmatpush1.bf16.msra.mxu0 0
    %806 = vmatprep.subr.bf16.mxu0 0
    %807 = vmatpush1.bf16.msra.mxu0 0
    %808 = vmatprep.subr.bf16.mxu0 0
    %809 = vmatpush1.bf16.msra.mxu0 0
    %810 = vmatprep.subr.bf16.mxu0 0
    %811 = vmatpush1.bf16.msra.mxu0 0
    %812 = vmatprep.subr.bf16.mxu0 0
    %813 = vmatpush1.bf16.msra.mxu0 0
    %814 = vmatprep.subr.bf16.mxu0 0
    %815 = vmatpush1.bf16.msra.mxu0 0
    %816 = vmatprep.subr.bf16.mxu0 0
    %817 = vmatpush1.bf16.msra.mxu0 0
    %818 = vmatprep.subr.bf16.mxu0 0
    %819 = vmatpush1.bf16.msra.mxu0 0
    %820 = vmatprep.subr.bf16.mxu0 0
    %821 = vmatpush1.bf16.msra.mxu0 0
    %822 = vmatprep.subr.bf16.mxu0 0
    %823 = vmatpush1.bf16.msra.mxu0 0
    %824 = vmatprep.subr.bf16.mxu0 0
    %825 = vmatpush1.bf16.msra.mxu0 0
    %826 = vmatprep.mubr.bf16.mxu0 0
    %827 = vmatmul.mubr.bf16.gmra.mrb[0].mxu0 %v789
    %v828 = vpop.f32.mrb[0].mxu0
    %v829 = vadd.f32 %v774, %v828
    %v830 = vpop.f32.mrb[0].mxu0
    %v831 = vpop.f32.mrb[0].mxu0
    %v832 = vadd.f32 %v774, %v831
    %v833 = vpop.f32.mrb[0].mxu0
    %834 = vmatprep.mubr.bf16.mxu0 0
    %835 = vmatmul.mubr.bf16.gmra.mrb[0].mxu0 %v792
    %v836 = vpop.f32.mrb[0].mxu0
    %v837 = vadd.f32 %v774, %v836
    %v838 = vpop.f32.mrb[0].mxu0
    %v839 = vpop.f32.mrb[0].mxu0
    %v840 = vadd.f32 %v774, %v839
    %v841 = vpop.f32.mrb[0].mxu0
    %842 = vdwg.mxu0
    %v843 = vmax.f32 %v829, 0.0
    %v844 = vmax.f32 %v832, 0.0
    %v845 = vmax.f32 %v837, 0.0
    %v846 = vmax.f32 %v840, 0.0
    %v847 = vld [vmem:[%s4 + $0x28] sm:$0xf]
    %v848 = vld [vmem:[%s4 + $0x2c] sm:$0xf]
    %v849 = vld [vmem:[%s4 + $0x30] sm:$0xf]
    %v850 = vld [vmem:[%s4 + $0x34] sm:$0xf]
    %v851 = vld [vmem:[%s4 + $0x38] sm:$0xf]
    %v852 = vld [vmem:[%s4 + $0x3c] sm:$0xf]
    %v853 = vld [vmem:[%s4 + $0x40] sm:$0xf]
    %v854 = vld [vmem:[%s4 + $0x44] sm:$0xf]
    %v855 = vld [vmem:[%s4 + $0x48] sm:$0xf]
    %v856 = vld [vmem:[%s4 + $0x4c] sm:$0xf]
    %v857 = vld [vmem:[%s4 + $0x50] sm:$0xf]
    %v858 = vld [vmem:[%s4 + $0x54] sm:$0xf]
    %v859 = vld [vmem:[%s4 + $0x58] sm:$0x1]
    %v860 = vpack.c.bf16 %v844, %v843
    %v861 = vpack.c.bf16 %v846, %v845
    %v862 = vunpack.c.l.bf16 %v859
    %v863 = vlaneseq
    %v864 = vshrl.u32 %v863, 7
    %v865 = vsub.s32 0, %v864
    %v866 = vrot.slane %v862, %v865
    %v879 = vunpack.c.l.b16 %v847
    %v880 = vunpack.c.l.b16 %v848
    %v881 = vunpack.c.l.b16 %v849
    %v882 = vunpack.c.l.b16 %v850
    %v883 = vunpack.c.l.b16 %v851
    %v884 = vunpack.c.l.b16 %v852
    %v885 = vunpack.c.l.b16 %v853
    %v886 = vunpack.c.l.b16 %v854
    %v887 = vunpack.c.l.b16 %v855
    %v888 = vunpack.c.l.b16 %v856
    %v889 = vunpack.c.l.b16 %v857
    %v890 = vunpack.c.l.b16 %v858
    %v891 = vpack.c.b16 %v880, %v879
    %v892 = vpack.c.b16 %v882, %v881
    %v893 = vpack.c.b16 %v884, %v883
    %v894 = vpack.c.b16 %v886, %v885
    %v895 = vpack.c.b16 %v888, %v887
    %v896 = vpack.c.b16 %v890, %v889
    %vm903 = vcmask 785408
    %v905 = vsel %vm903, %v860, 0
    %v908 = vsel %vm903, %v861, 0
    %910 = vmatprep.subr.bf16.mxu0 0
    %911 = vmatpush1.bf16.msra.mxu0 %v891
    %912 = vmatprep.subr.bf16.mxu0 0
    %913 = vmatpush1.bf16.msra.mxu0 %v892
    %914 = vmatprep.subr.bf16.mxu0 0
    %915 = vmatpush1.bf16.msra.mxu0 %v893
    %916 = vmatprep.subr.bf16.mxu0 0
    %917 = vmatpush1.bf16.msra.mxu0 %v894
    %918 = vmatprep.subr.bf16.mxu0 0
    %919 = vmatpush1.bf16.msra.mxu0 %v895
    %920 = vmatprep.subr.bf16.mxu0 0
    %921 = vmatpush1.bf16.msra.mxu0 %v896
    %922 = vmatprep.subr.bf16.mxu0 0
    %923 = vmatpush1.bf16.msra.mxu0 0
    %924 = vmatprep.subr.bf16.mxu0 0
    %925 = vmatpush1.bf16.msra.mxu0 0
    %926 = vmatprep.subr.bf16.mxu0 0
    %927 = vmatpush1.bf16.msra.mxu0 0
    %928 = vmatprep.subr.bf16.mxu0 0
    %929 = vmatpush1.bf16.msra.mxu0 0
    %930 = vmatprep.subr.bf16.mxu0 0
    %931 = vmatpush1.bf16.msra.mxu0 0
    %932 = vmatprep.subr.bf16.mxu0 0
    %933 = vmatpush1.bf16.msra.mxu0 0
    %934 = vmatprep.subr.bf16.mxu0 0
    %935 = vmatpush1.bf16.msra.mxu0 0
    %936 = vmatprep.subr.bf16.mxu0 0
    %937 = vmatpush1.bf16.msra.mxu0 0
    %938 = vmatprep.subr.bf16.mxu0 0
    %939 = vmatpush1.bf16.msra.mxu0 0
    %940 = vmatprep.subr.bf16.mxu0 0
    %941 = vmatpush1.bf16.msra.mxu0 0
    %942 = vmatprep.mubr.bf16.mxu0 0
    %943 = vmatmul.mubr.bf16.gmra.mrb[0].mxu0 %v905
    %v944 = vpop.f32.mrb[0].mxu0
    %v945 = vadd.f32 %v866, %v944
    %v946 = vpop.f32.mrb[0].mxu0
    %v947 = vpop.f32.mrb[0].mxu0
    %v948 = vadd.f32 %v866, %v947
    %v949 = vpop.f32.mrb[0].mxu0
    %950 = vmatprep.mubr.bf16.mxu0 0
    %951 = vmatmul.mubr.bf16.gmra.mrb[0].mxu0 %v908
    %v952 = vpop.f32.mrb[0].mxu0
    %v953 = vadd.f32 %v866, %v952
    %v954 = vpop.f32.mrb[0].mxu0
    %v955 = vpop.f32.mrb[0].mxu0
    %v956 = vadd.f32 %v866, %v955
    %v957 = vpop.f32.mrb[0].mxu0
    %958 = vdwg.mxu0
    %959 = vst.msk [vmem:[#allocation2] sm:$0xff] %vm787, %v755
    %960 = vst.msk [vmem:[#allocation2 + $0x8] sm:$0xff] %vm787, %v756
    %vm961 = vcmask 56320
    %962 = vst.msk [vmem:[%s5] sm:$0xff] %vm961, %v945
    %963 = vst.msk [vmem:[%s5 + $0x8] sm:$0xff] %vm961, %v948
    %s964 = scalar_lea.vmem [#allocation2], 16
    %965 = vst.msk [vmem:[%s964] sm:$0xff] %vm787, %v761
    %966 = vst.msk [vmem:[%s964 + $0x8] sm:$0xff] %vm787, %v762
    %s967 = scalar_lea.vmem %s5, 16
    %968 = vst.msk [vmem:[%s967] sm:$0xff] %vm961, %v953
    %969 = vst.msk [vmem:[%s967 + $0x8] sm:$0xff] %vm961, %v956
    // Predicated region
    $region22: #{tpu_custom_call.1} parent=1 // pred_check
      _
    $region23: #{tpu_custom_call.1} parent=1 // pred_check_branch
      %971 = sbr.rel (0) target = $region25
    $region24: #{tpu_custom_call.1} parent=1 // pred_region
      _
    $region25: #{tpu_custom_call.1} parent=1 // pred_fallthru
      _
    // Predicated region
    $region26: #{tpu_custom_call.1} parent=1 // pred_check
      _
    $region27: #{tpu_custom_call.1} parent=1 // pred_check_branch
      %973 = sbr.rel (0) target = $region29
    $region28: #{tpu_custom_call.1} parent=1 // pred_region
      %s975 = ssub.s32 512, 512
      %976 = vsyncadd [#allocation3], %s975
      %s977 = sshll.u32 [#allocation2], 4
      %s978 = int_to_ptr.vmem [resolvable:$true] %s977
      %983 = dma.vmem_to_hbm [thread:$0]  %s978, 512, %s6, [#allocation3], 128, 128, 8
    $region29: #{tpu_custom_call.1} parent=1 // pred_fallthru
      _
    // Predicated region
    $region30: #{tpu_custom_call.1} parent=1 // pred_check
      _
    $region31: #{tpu_custom_call.1} parent=1 // pred_check_branch
      %985 = sbr.rel (0) target = $region33
    $region32: #{tpu_custom_call.1} parent=1 // pred_region
      _
    $region33: #{tpu_custom_call.1} parent=1 // pred_fallthru
      _
    // Predicated region
    $region34: #{tpu_custom_call.1} parent=1 // pred_check
      _
    $region35: #{tpu_custom_call.1} parent=1 // pred_check_branch
      %987 = sbr.rel (0) target = $region37
    $region36: #{tpu_custom_call.1} parent=1 // pred_region
      %988 = dma.done [#allocation3], 512
    $region37: #{tpu_custom_call.1} parent=1 // pred_fallthru
      _
    %989 = vsyncpa [#allocation3], 1

</llo_original>
